<compile_context>
chip_gen: v7x
topology: tpu7x:2x2x1
jax: 0.10.0
libtpu: 0.0.40
codegen_flags: <defaults>
</compile_context>

<pallas_src>
import jax
import jax.numpy as jnp
from jax import lax
from jax.experimental import pallas as pl
from jax.experimental.pallas import tpu as pltpu

# ---- small, module-consistent config (hid_dim % n_heads == 0) -------------
B = 2            # batch
S = 8            # sequence length
H = 20           # hid_dim
N_HEADS = 5
HEAD_DIM = H // N_HEADS    # 4
PF = 32          # pf_dim
SCALE = float(HEAD_DIM) ** 0.5
LN_EPS = 1e-5
INV_SQRT2 = 0.7071067811865476

# ---- packed-parameter slab layout (single lane-dense (112,128) f32 slab) ---
ROW_WQKV = 0                 # rows 0..19,  cols 0:60   [Wq/scale | Wk | Wv]
ROW_BQKV = H                 # row  20,     cols 0:60   [bq/scale | bk | bv]
ROW_WO   = 24                # rows 24..43, cols 0:20
ROW_BO   = ROW_WO + H        # row  44
ROW_G1   = 45                # row  45
ROW_BE1  = 46                # row  46
ROW_W1   = 48                # rows 48..67, cols 0:32
ROW_BF1  = ROW_W1 + H        # row  68
ROW_W2   = 72                # rows 72..103, cols 0:20
ROW_BF2  = ROW_W2 + PF       # row  104
ROW_G2   = 105               # row  105
ROW_BE2  = 106               # row  106
R_PARAMS = 112               # padded to a multiple of 8 sublanes
P_LANES = 128


def _layernorm(y, gamma, beta):
    mu = jnp.mean(y, axis=-1, keepdims=True)
    var = jnp.mean((y - mu) ** 2, axis=-1, keepdims=True)
    return (y - mu) * lax.rsqrt(var + LN_EPS) * gamma + beta


def encoder_layer_kernel(x_ref, p_ref, out_ref):
    f32 = jnp.float32

    x = x_ref[...].astype(f32)                 # (B*S, H) = (16, 20)
    P = p_ref[...]                             # (112, 128) packed params

    # ---- carve the single parameter slab (value slices, no extra DMAs) ----
    w_qkv = P[ROW_WQKV:ROW_WQKV + H, 0:3 * H]          # (20, 60)
    b_qkv = P[ROW_BQKV:ROW_BQKV + 1, 0:3 * H]          # (1, 60)
    w_o   = P[ROW_WO:ROW_WO + H, 0:H]                  # (20, 20)
    b_o   = P[ROW_BO:ROW_BO + 1, 0:H]
    g1    = P[ROW_G1:ROW_G1 + 1, 0:H]
    be1   = P[ROW_BE1:ROW_BE1 + 1, 0:H]
    w_1   = P[ROW_W1:ROW_W1 + H, 0:PF]                 # (20, 32)
    b_1   = P[ROW_BF1:ROW_BF1 + 1, 0:PF]
    w_2   = P[ROW_W2:ROW_W2 + PF, 0:H]                 # (32, 20)
    b_2   = P[ROW_BF2:ROW_BF2 + 1, 0:H]
    g2    = P[ROW_G2:ROW_G2 + 1, 0:H]
    be2   = P[ROW_BE2:ROW_BE2 + 1, 0:H]

    # ---- fused Q/K/V projection: ONE matmul (1/sqrt(d) pre-folded into Q) --
    qkv = jnp.dot(x, w_qkv, preferred_element_type=f32) + b_qkv   # (16, 60)
    q = qkv[:, 0:H]
    k = qkv[:, H:2 * H]
    v = qkv[:, 2 * H:3 * H]

    # ---- head/batch split into a single leading batch dim (no mask needed) -
    def split_heads(t):
        # (B*S, NH*d) -> (B*NH, S, d); static sublane/lane slices + major stack
        return jnp.stack(
            [t[b * S:(b + 1) * S, h * HEAD_DIM:(h + 1) * HEAD_DIM]
             for b in range(B) for h in range(N_HEADS)], axis=0)

    qh = split_heads(q)                                            # (10, 8, 4)
    kh = split_heads(k)
    vh = split_heads(v)

    # ---- attention over (batch*head, S, S) = (10, 8, 8) --------------------
    e = jnp.einsum('bqd,bkd->bqk', qh, kh, preferred_element_type=f32)
    e = e - jnp.max(e, axis=-1, keepdims=True)
    p = jnp.exp(e)
    denom = jnp.sum(p, axis=-1, keepdims=True)
    r = pl.reciprocal(denom, approx=True)      # EUP slot
    r = r * (2.0 - denom * r)                  # one Newton step -> f32 accuracy
    p = p * r
    o = jnp.einsum('bqk,bkd->bqd', p, vh, preferred_element_type=f32)  # (10,8,4)

    # ---- head-minor reassembly + single output projection matmul ----------
    o_cat = jnp.concatenate(
        [jnp.concatenate([o[b * N_HEADS + h] for h in range(N_HEADS)], axis=-1)
         for b in range(B)], axis=0)                               # (16, 20)
    attn = jnp.dot(o_cat, w_o, preferred_element_type=f32) + b_o   # (16, 20)

    # ---- residual + layernorm 1 --------------------------------------------
    y = _layernorm(x + attn, g1, be1)

    # ---- positionwise feedforward (exact-erf GELU, as in F.gelu) -----------
    hdn = jnp.dot(y, w_1, preferred_element_type=f32) + b_1        # (16, 32)
    hdn = 0.5 * hdn * (1.0 + lax.erf(hdn * INV_SQRT2))
    ff = jnp.dot(hdn, w_2, preferred_element_type=f32) + b_2       # (16, 20)

    # ---- residual + layernorm 2 --------------------------------------------
    out_ref[...] = _layernorm(y + ff, g2, be2).astype(out_ref.dtype)


# -------------------- host-side one-time parameter packing ------------------
def pack_params(params):
    (wq, bq, wk, bk, wv, bv, wo, bo, g1, be1, w1, bf1, w2, bf2, g2, be2) = params
    inv = 1.0 / SCALE
    P = jnp.zeros((R_PARAMS, P_LANES), jnp.float32)
    # fused QKV weight (scale folded into the Q section) + bias row
    P = P.at[ROW_WQKV:ROW_WQKV + H, 0:H].set(wq * inv)
    P = P.at[ROW_WQKV:ROW_WQKV + H, H:2 * H].set(wk)
    P = P.at[ROW_WQKV:ROW_WQKV + H, 2 * H:3 * H].set(wv)
    P = P.at[ROW_BQKV, 0:H].set(bq[0] * inv)
    P = P.at[ROW_BQKV, H:2 * H].set(bk[0])
    P = P.at[ROW_BQKV, 2 * H:3 * H].set(bv[0])
    # output projection
    P = P.at[ROW_WO:ROW_WO + H, 0:H].set(wo)
    P = P.at[ROW_BO, 0:H].set(bo[0])
    # layernorm 1
    P = P.at[ROW_G1, 0:H].set(g1[0])
    P = P.at[ROW_BE1, 0:H].set(be1[0])
    # feedforward
    P = P.at[ROW_W1:ROW_W1 + H, 0:PF].set(w1)
    P = P.at[ROW_BF1, 0:PF].set(bf1[0])
    P = P.at[ROW_W2:ROW_W2 + PF, 0:H].set(w2)
    P = P.at[ROW_BF2, 0:H].set(bf2[0])
    # layernorm 2
    P = P.at[ROW_G2, 0:H].set(g2[0])
    P = P.at[ROW_BE2, 0:H].set(be2[0])
    return P


# --------------------------------- wrapper ----------------------------------
def encoder_layer(src, packed_params):
    x2d = src.reshape(B * S, H)
    out = pl.pallas_call(
        encoder_layer_kernel,
        out_shape=jax.ShapeDtypeStruct((B * S, H), jnp.float32),
        grid_spec=pltpu.PrefetchScalarGridSpec(
            num_scalar_prefetch=0,
            grid=(1,),
            in_specs=[pl.BlockSpec((B * S, H), lambda i: (0, 0)),
                      pl.BlockSpec((R_PARAMS, P_LANES), lambda i: (0, 0))],
            out_specs=pl.BlockSpec((B * S, H), lambda i: (0, 0)),
        ),
        compiler_params=pltpu.CompilerParams(
            dimension_semantics=("arbitrary",)),
    )(x2d, packed_params)
    return out.reshape(B, S, H)


# --------------------------- pure-JAX reference -----------------------------
def encoder_layer_ref(src, params):
    (wq, bq, wk, bk, wv, bv, wo, bo, g1, be1, w1, bf1, w2, bf2, g2, be2) = params

    def ln(y, g, b):
        mu = jnp.mean(y, axis=-1, keepdims=True)
        var = jnp.mean((y - mu) ** 2, axis=-1, keepdims=True)
        return (y - mu) / jnp.sqrt(var + LN_EPS) * g[0] + b[0]

    q = src @ wq + bq[0]
    k = src @ wk + bk[0]
    v = src @ wv + bv[0]
    qh = q.reshape(B, S, N_HEADS, HEAD_DIM).transpose(0, 2, 1, 3)
    kh = k.reshape(B, S, N_HEADS, HEAD_DIM).transpose(0, 2, 1, 3)
    vh = v.reshape(B, S, N_HEADS, HEAD_DIM).transpose(0, 2, 1, 3)
    e = jnp.einsum("bhqd,bhkd->bhqk", qh, kh) / SCALE
    a = jax.nn.softmax(e, axis=-1)
    o = jnp.einsum("bhqk,bhkd->bhqd", a, vh).transpose(0, 2, 1, 3).reshape(B, S, H)
    o = o @ wo + bo[0]
    y = ln(src + o, g1, be1)
    hdn = jax.nn.gelu(y @ w1 + bf1[0], approximate=False)
    ff = hdn @ w2 + bf2[0]
    return ln(y + ff, g2, be2)


# ------------------------------- main ---------------------------------------
if __name__ == "__main__":
    key = jax.random.PRNGKey(0)
    ks = jax.random.split(key, 16)

    def lin(kk, fan_in, fan_out):
        w = jax.random.normal(kk, (fan_in, fan_out), jnp.float32) * 0.05
        b = jnp.linspace(-0.1, 0.1, fan_out, dtype=jnp.float32).reshape(1, fan_out)
        return w, b

    wq, bq = lin(ks[0], H, H)
    wk, bk = lin(ks[1], H, H)
    wv, bv = lin(ks[2], H, H)
    wo, bo = lin(ks[3], H, H)
    g1 = jnp.ones((1, H), jnp.float32) + 0.01 * jnp.arange(H, dtype=jnp.float32)
    be1 = 0.02 * jnp.arange(H, dtype=jnp.float32).reshape(1, H)
    w1, bf1 = lin(ks[4], H, PF)
    w2, bf2 = lin(ks[5], PF, H)
    g2 = jnp.ones((1, H), jnp.float32) - 0.01 * jnp.arange(H, dtype=jnp.float32)
    be2 = -0.02 * jnp.arange(H, dtype=jnp.float32).reshape(1, H)

    params = (wq, bq, wk, bk, wv, bv, wo, bo, g1, be1, w1, bf1, w2, bf2, g2, be2)
    packed = pack_params(params)          # one-time host-side weight transform

    src = jax.random.normal(ks[6], (B, S, H), jnp.float32)

    out = encoder_layer(src, packed)
    out = jax.block_until_ready(out)

    ref = encoder_layer_ref(src, params)
    assert out.shape == (B, S, H)
    assert jnp.allclose(out, ref, atol=1e-4, rtol=1e-4), (
        f"max abs err {jnp.max(jnp.abs(out - ref))}")

    print("KERNEL_OK")
</pallas_src>

<mosaic_0001>
module attributes {stable_mosaic.version = 11 : i64} {
  func.func @encoder_layer_kernel(%arg0: i32, %arg1: memref<16x20xf32, #tpu.memory_space<vmem>>, %arg2: memref<112x128xf32, #tpu.memory_space<vmem>>, %arg3: memref<16x20xf32, #tpu.memory_space<vmem>>) attributes {dimension_semantics = [#tpu.dimension_semantics<arbitrary>], iteration_bounds = array<i64: 1>, scalar_prefetch = 0 : i64, scratch_operands = 0 : i64, tpu.core_type = #tpu.core_type<tc>, window_params = [{pipeline_mode = #tpu.pipeline_mode<synchronous>, transform_indices = @transform_0, window_bounds = array<i64: 16, 20>}, {pipeline_mode = #tpu.pipeline_mode<synchronous>, transform_indices = @transform_1, window_bounds = array<i64: 112, 128>}, {pipeline_mode = #tpu.pipeline_mode<synchronous>, transform_indices = @transform_2, window_bounds = array<i64: 16, 20>}]} {
    %c0 = arith.constant 0 : index
    %c0_0 = arith.constant 0 : index
    %0 = vector.load %arg1[%c0, %c0_0] : memref<16x20xf32, #tpu.memory_space<vmem>>, vector<16x20xf32>
    %c0_1 = arith.constant 0 : index
    %c0_2 = arith.constant 0 : index
    %1 = vector.load %arg2[%c0_1, %c0_2] : memref<112x128xf32, #tpu.memory_space<vmem>>, vector<112x128xf32>
    %2 = vector.extract_strided_slice %1 {offsets = [0, 0], sizes = [20, 60], strides = [1, 1]} : vector<112x128xf32> to vector<20x60xf32>
    %3 = vector.extract_strided_slice %1 {offsets = [20, 0], sizes = [1, 60], strides = [1, 1]} : vector<112x128xf32> to vector<1x60xf32>
    %4 = vector.extract_strided_slice %1 {offsets = [24, 0], sizes = [20, 20], strides = [1, 1]} : vector<112x128xf32> to vector<20x20xf32>
    %5 = vector.extract_strided_slice %1 {offsets = [44, 0], sizes = [1, 20], strides = [1, 1]} : vector<112x128xf32> to vector<1x20xf32>
    %6 = vector.extract_strided_slice %1 {offsets = [45, 0], sizes = [1, 20], strides = [1, 1]} : vector<112x128xf32> to vector<1x20xf32>
    %7 = vector.extract_strided_slice %1 {offsets = [46, 0], sizes = [1, 20], strides = [1, 1]} : vector<112x128xf32> to vector<1x20xf32>
    %8 = vector.extract_strided_slice %1 {offsets = [48, 0], sizes = [20, 32], strides = [1, 1]} : vector<112x128xf32> to vector<20x32xf32>
    %9 = vector.extract_strided_slice %1 {offsets = [68, 0], sizes = [1, 32], strides = [1, 1]} : vector<112x128xf32> to vector<1x32xf32>
    %10 = vector.extract_strided_slice %1 {offsets = [72, 0], sizes = [32, 20], strides = [1, 1]} : vector<112x128xf32> to vector<32x20xf32>
    %11 = vector.extract_strided_slice %1 {offsets = [104, 0], sizes = [1, 20], strides = [1, 1]} : vector<112x128xf32> to vector<1x20xf32>
    %12 = vector.extract_strided_slice %1 {offsets = [105, 0], sizes = [1, 20], strides = [1, 1]} : vector<112x128xf32> to vector<1x20xf32>
    %13 = vector.extract_strided_slice %1 {offsets = [106, 0], sizes = [1, 20], strides = [1, 1]} : vector<112x128xf32> to vector<1x20xf32>
    %cst = arith.constant dense<0.000000e+00> : vector<16x60xf32>
    %14 = tpu.matmul %0, %2, %cst {dimension_numbers = #tpu.dot_dimension_numbers<[1], [0], [0], [1], [0, 0, 1, 1], [], []>} : vector<16x20xf32>, vector<20x60xf32>, vector<16x60xf32> -> vector<16x60xf32>
    %15 = vector.broadcast %3 : vector<1x60xf32> to vector<16x60xf32>
    %16 = arith.addf %14, %15 : vector<16x60xf32>
    %17 = vector.extract_strided_slice %16 {offsets = [0, 0], sizes = [16, 20], strides = [1, 1]} : vector<16x60xf32> to vector<16x20xf32>
    %18 = vector.extract_strided_slice %16 {offsets = [0, 20], sizes = [16, 20], strides = [1, 1]} : vector<16x60xf32> to vector<16x20xf32>
    %19 = vector.extract_strided_slice %16 {offsets = [0, 40], sizes = [16, 20], strides = [1, 1]} : vector<16x60xf32> to vector<16x20xf32>
    %20 = vector.extract_strided_slice %17 {offsets = [0, 0], sizes = [8, 4], strides = [1, 1]} : vector<16x20xf32> to vector<8x4xf32>
    %21 = vector.extract_strided_slice %17 {offsets = [0, 4], sizes = [8, 4], strides = [1, 1]} : vector<16x20xf32> to vector<8x4xf32>
    %22 = vector.extract_strided_slice %17 {offsets = [0, 8], sizes = [8, 4], strides = [1, 1]} : vector<16x20xf32> to vector<8x4xf32>
    %23 = vector.extract_strided_slice %17 {offsets = [0, 12], sizes = [8, 4], strides = [1, 1]} : vector<16x20xf32> to vector<8x4xf32>
    %24 = vector.extract_strided_slice %17 {offsets = [0, 16], sizes = [8, 4], strides = [1, 1]} : vector<16x20xf32> to vector<8x4xf32>
    %25 = vector.extract_strided_slice %17 {offsets = [8, 0], sizes = [8, 4], strides = [1, 1]} : vector<16x20xf32> to vector<8x4xf32>
    %26 = vector.extract_strided_slice %17 {offsets = [8, 4], sizes = [8, 4], strides = [1, 1]} : vector<16x20xf32> to vector<8x4xf32>
    %27 = vector.extract_strided_slice %17 {offsets = [8, 8], sizes = [8, 4], strides = [1, 1]} : vector<16x20xf32> to vector<8x4xf32>
    %28 = vector.extract_strided_slice %17 {offsets = [8, 12], sizes = [8, 4], strides = [1, 1]} : vector<16x20xf32> to vector<8x4xf32>
    %29 = vector.extract_strided_slice %17 {offsets = [8, 16], sizes = [8, 4], strides = [1, 1]} : vector<16x20xf32> to vector<8x4xf32>
    %30 = vector.shape_cast %20 : vector<8x4xf32> to vector<1x8x4xf32>
    %31 = vector.shape_cast %21 : vector<8x4xf32> to vector<1x8x4xf32>
    %32 = vector.shape_cast %22 : vector<8x4xf32> to vector<1x8x4xf32>
    %33 = vector.shape_cast %23 : vector<8x4xf32> to vector<1x8x4xf32>
    %34 = vector.shape_cast %24 : vector<8x4xf32> to vector<1x8x4xf32>
    %35 = vector.shape_cast %25 : vector<8x4xf32> to vector<1x8x4xf32>
    %36 = vector.shape_cast %26 : vector<8x4xf32> to vector<1x8x4xf32>
    %37 = vector.shape_cast %27 : vector<8x4xf32> to vector<1x8x4xf32>
    %38 = vector.shape_cast %28 : vector<8x4xf32> to vector<1x8x4xf32>
    %39 = vector.shape_cast %29 : vector<8x4xf32> to vector<1x8x4xf32>
    %40 = tpu.concatenate %30, %31, %32, %33, %34, %35, %36, %37, %38, %39 in 0 : vector<1x8x4xf32>, vector<1x8x4xf32>, vector<1x8x4xf32>, vector<1x8x4xf32>, vector<1x8x4xf32>, vector<1x8x4xf32>, vector<1x8x4xf32>, vector<1x8x4xf32>, vector<1x8x4xf32>, vector<1x8x4xf32> -> vector<10x8x4xf32>
    %41 = vector.extract_strided_slice %18 {offsets = [0, 0], sizes = [8, 4], strides = [1, 1]} : vector<16x20xf32> to vector<8x4xf32>
    %42 = vector.extract_strided_slice %18 {offsets = [0, 4], sizes = [8, 4], strides = [1, 1]} : vector<16x20xf32> to vector<8x4xf32>
    %43 = vector.extract_strided_slice %18 {offsets = [0, 8], sizes = [8, 4], strides = [1, 1]} : vector<16x20xf32> to vector<8x4xf32>
    %44 = vector.extract_strided_slice %18 {offsets = [0, 12], sizes = [8, 4], strides = [1, 1]} : vector<16x20xf32> to vector<8x4xf32>
    %45 = vector.extract_strided_slice %18 {offsets = [0, 16], sizes = [8, 4], strides = [1, 1]} : vector<16x20xf32> to vector<8x4xf32>
    %46 = vector.extract_strided_slice %18 {offsets = [8, 0], sizes = [8, 4], strides = [1, 1]} : vector<16x20xf32> to vector<8x4xf32>
    %47 = vector.extract_strided_slice %18 {offsets = [8, 4], sizes = [8, 4], strides = [1, 1]} : vector<16x20xf32> to vector<8x4xf32>
    %48 = vector.extract_strided_slice %18 {offsets = [8, 8], sizes = [8, 4], strides = [1, 1]} : vector<16x20xf32> to vector<8x4xf32>
    %49 = vector.extract_strided_slice %18 {offsets = [8, 12], sizes = [8, 4], strides = [1, 1]} : vector<16x20xf32> to vector<8x4xf32>
    %50 = vector.extract_strided_slice %18 {offsets = [8, 16], sizes = [8, 4], strides = [1, 1]} : vector<16x20xf32> to vector<8x4xf32>
    %51 = vector.shape_cast %41 : vector<8x4xf32> to vector<1x8x4xf32>
    %52 = vector.shape_cast %42 : vector<8x4xf32> to vector<1x8x4xf32>
    %53 = vector.shape_cast %43 : vector<8x4xf32> to vector<1x8x4xf32>
    %54 = vector.shape_cast %44 : vector<8x4xf32> to vector<1x8x4xf32>
    %55 = vector.shape_cast %45 : vector<8x4xf32> to vector<1x8x4xf32>
    %56 = vector.shape_cast %46 : vector<8x4xf32> to vector<1x8x4xf32>
    %57 = vector.shape_cast %47 : vector<8x4xf32> to vector<1x8x4xf32>
    %58 = vector.shape_cast %48 : vector<8x4xf32> to vector<1x8x4xf32>
    %59 = vector.shape_cast %49 : vector<8x4xf32> to vector<1x8x4xf32>
    %60 = vector.shape_cast %50 : vector<8x4xf32> to vector<1x8x4xf32>
    %61 = tpu.concatenate %51, %52, %53, %54, %55, %56, %57, %58, %59, %60 in 0 : vector<1x8x4xf32>, vector<1x8x4xf32>, vector<1x8x4xf32>, vector<1x8x4xf32>, vector<1x8x4xf32>, vector<1x8x4xf32>, vector<1x8x4xf32>, vector<1x8x4xf32>, vector<1x8x4xf32>, vector<1x8x4xf32> -> vector<10x8x4xf32>
    %62 = vector.extract_strided_slice %19 {offsets = [0, 0], sizes = [8, 4], strides = [1, 1]} : vector<16x20xf32> to vector<8x4xf32>
    %63 = vector.extract_strided_slice %19 {offsets = [0, 4], sizes = [8, 4], strides = [1, 1]} : vector<16x20xf32> to vector<8x4xf32>
    %64 = vector.extract_strided_slice %19 {offsets = [0, 8], sizes = [8, 4], strides = [1, 1]} : vector<16x20xf32> to vector<8x4xf32>
    %65 = vector.extract_strided_slice %19 {offsets = [0, 12], sizes = [8, 4], strides = [1, 1]} : vector<16x20xf32> to vector<8x4xf32>
    %66 = vector.extract_strided_slice %19 {offsets = [0, 16], sizes = [8, 4], strides = [1, 1]} : vector<16x20xf32> to vector<8x4xf32>
    %67 = vector.extract_strided_slice %19 {offsets = [8, 0], sizes = [8, 4], strides = [1, 1]} : vector<16x20xf32> to vector<8x4xf32>
    %68 = vector.extract_strided_slice %19 {offsets = [8, 4], sizes = [8, 4], strides = [1, 1]} : vector<16x20xf32> to vector<8x4xf32>
    %69 = vector.extract_strided_slice %19 {offsets = [8, 8], sizes = [8, 4], strides = [1, 1]} : vector<16x20xf32> to vector<8x4xf32>
    %70 = vector.extract_strided_slice %19 {offsets = [8, 12], sizes = [8, 4], strides = [1, 1]} : vector<16x20xf32> to vector<8x4xf32>
    %71 = vector.extract_strided_slice %19 {offsets = [8, 16], sizes = [8, 4], strides = [1, 1]} : vector<16x20xf32> to vector<8x4xf32>
    %72 = vector.shape_cast %62 : vector<8x4xf32> to vector<1x8x4xf32>
    %73 = vector.shape_cast %63 : vector<8x4xf32> to vector<1x8x4xf32>
    %74 = vector.shape_cast %64 : vector<8x4xf32> to vector<1x8x4xf32>
    %75 = vector.shape_cast %65 : vector<8x4xf32> to vector<1x8x4xf32>
    %76 = vector.shape_cast %66 : vector<8x4xf32> to vector<1x8x4xf32>
    %77 = vector.shape_cast %67 : vector<8x4xf32> to vector<1x8x4xf32>
    %78 = vector.shape_cast %68 : vector<8x4xf32> to vector<1x8x4xf32>
    %79 = vector.shape_cast %69 : vector<8x4xf32> to vector<1x8x4xf32>
    %80 = vector.shape_cast %70 : vector<8x4xf32> to vector<1x8x4xf32>
    %81 = vector.shape_cast %71 : vector<8x4xf32> to vector<1x8x4xf32>
    %82 = tpu.concatenate %72, %73, %74, %75, %76, %77, %78, %79, %80, %81 in 0 : vector<1x8x4xf32>, vector<1x8x4xf32>, vector<1x8x4xf32>, vector<1x8x4xf32>, vector<1x8x4xf32>, vector<1x8x4xf32>, vector<1x8x4xf32>, vector<1x8x4xf32>, vector<1x8x4xf32>, vector<1x8x4xf32> -> vector<10x8x4xf32>
    "tpu.trace_start"() <{level = 10 : i32, message = "bqd,bkd->bqk"}> : () -> ()
    %cst_3 = arith.constant dense<0.000000e+00> : vector<10x8x8xf32>
    %83 = tpu.matmul %40, %61, %cst_3 {dimension_numbers = #tpu.dot_dimension_numbers<[2], [2], [1], [1], [0, 0, 0, 1, 1, 1], [0], [0]>} : vector<10x8x4xf32>, vector<10x8x4xf32>, vector<10x8x8xf32> -> vector<10x8x8xf32>
    "tpu.trace_stop"() : () -> ()
    %cst_4 = arith.constant dense<0xFF800000> : vector<10x8xf32>
    %84 = vector.multi_reduction <maximumf>, %83, %cst_4 [2] : vector<10x8x8xf32> to vector<10x8xf32>
    %85 = vector.shape_cast %84 : vector<10x8xf32> to vector<10x8x1xf32>
    %86 = vector.broadcast %85 : vector<10x8x1xf32> to vector<10x8x8xf32>
    %87 = arith.subf %83, %86 : vector<10x8x8xf32>
    %88 = math.exp %87 : vector<10x8x8xf32>
    %cst_5 = arith.constant dense<0.000000e+00> : vector<10x8xf32>
    %89 = vector.multi_reduction <add>, %88, %cst_5 [2] : vector<10x8x8xf32> to vector<10x8xf32>
    %90 = vector.shape_cast %89 : vector<10x8xf32> to vector<10x8x1xf32>
    %91 = tpu.reciprocal %90 {approx = true} : vector<10x8x1xf32> -> vector<10x8x1xf32>
    %92 = arith.mulf %90, %91 : vector<10x8x1xf32>
    %cst_6 = arith.constant 2.000000e+00 : f32
    %93 = vector.broadcast %cst_6 : f32 to vector<10x8x1xf32>
    %94 = arith.subf %93, %92 : vector<10x8x1xf32>
    %95 = arith.mulf %91, %94 : vector<10x8x1xf32>
    %96 = vector.broadcast %95 : vector<10x8x1xf32> to vector<10x8x8xf32>
    %97 = arith.mulf %88, %96 : vector<10x8x8xf32>
    "tpu.trace_start"() <{level = 10 : i32, message = "bqk,bkd->bqd"}> : () -> ()
    %cst_7 = arith.constant dense<0.000000e+00> : vector<10x8x4xf32>
    %98 = tpu.matmul %97, %82, %cst_7 {dimension_numbers = #tpu.dot_dimension_numbers<[2], [1], [1], [2], [0, 0, 0, 1, 1, 2], [0], [0]>} : vector<10x8x8xf32>, vector<10x8x4xf32>, vector<10x8x4xf32> -> vector<10x8x4xf32>
    "tpu.trace_stop"() : () -> ()
    %99 = vector.extract_strided_slice %98 {offsets = [0, 0, 0], sizes = [1, 8, 4], strides = [1, 1, 1]} : vector<10x8x4xf32> to vector<1x8x4xf32>
    %100 = vector.shape_cast %99 : vector<1x8x4xf32> to vector<8x4xf32>
    %101 = vector.extract_strided_slice %98 {offsets = [1, 0, 0], sizes = [1, 8, 4], strides = [1, 1, 1]} : vector<10x8x4xf32> to vector<1x8x4xf32>
    %102 = vector.shape_cast %101 : vector<1x8x4xf32> to vector<8x4xf32>
    %103 = vector.extract_strided_slice %98 {offsets = [2, 0, 0], sizes = [1, 8, 4], strides = [1, 1, 1]} : vector<10x8x4xf32> to vector<1x8x4xf32>
    %104 = vector.shape_cast %103 : vector<1x8x4xf32> to vector<8x4xf32>
    %105 = vector.extract_strided_slice %98 {offsets = [3, 0, 0], sizes = [1, 8, 4], strides = [1, 1, 1]} : vector<10x8x4xf32> to vector<1x8x4xf32>
    %106 = vector.shape_cast %105 : vector<1x8x4xf32> to vector<8x4xf32>
    %107 = vector.extract_strided_slice %98 {offsets = [4, 0, 0], sizes = [1, 8, 4], strides = [1, 1, 1]} : vector<10x8x4xf32> to vector<1x8x4xf32>
    %108 = vector.shape_cast %107 : vector<1x8x4xf32> to vector<8x4xf32>
    %109 = tpu.concatenate %100, %102, %104, %106, %108 in 1 : vector<8x4xf32>, vector<8x4xf32>, vector<8x4xf32>, vector<8x4xf32>, vector<8x4xf32> -> vector<8x20xf32>
    %110 = vector.extract_strided_slice %98 {offsets = [5, 0, 0], sizes = [1, 8, 4], strides = [1, 1, 1]} : vector<10x8x4xf32> to vector<1x8x4xf32>
    %111 = vector.shape_cast %110 : vector<1x8x4xf32> to vector<8x4xf32>
    %112 = vector.extract_strided_slice %98 {offsets = [6, 0, 0], sizes = [1, 8, 4], strides = [1, 1, 1]} : vector<10x8x4xf32> to vector<1x8x4xf32>
    %113 = vector.shape_cast %112 : vector<1x8x4xf32> to vector<8x4xf32>
    %114 = vector.extract_strided_slice %98 {offsets = [7, 0, 0], sizes = [1, 8, 4], strides = [1, 1, 1]} : vector<10x8x4xf32> to vector<1x8x4xf32>
    %115 = vector.shape_cast %114 : vector<1x8x4xf32> to vector<8x4xf32>
    %116 = vector.extract_strided_slice %98 {offsets = [8, 0, 0], sizes = [1, 8, 4], strides = [1, 1, 1]} : vector<10x8x4xf32> to vector<1x8x4xf32>
    %117 = vector.shape_cast %116 : vector<1x8x4xf32> to vector<8x4xf32>
    %118 = vector.extract_strided_slice %98 {offsets = [9, 0, 0], sizes = [1, 8, 4], strides = [1, 1, 1]} : vector<10x8x4xf32> to vector<1x8x4xf32>
    %119 = vector.shape_cast %118 : vector<1x8x4xf32> to vector<8x4xf32>
    %120 = tpu.concatenate %111, %113, %115, %117, %119 in 1 : vector<8x4xf32>, vector<8x4xf32>, vector<8x4xf32>, vector<8x4xf32>, vector<8x4xf32> -> vector<8x20xf32>
    %121 = tpu.concatenate %109, %120 in 0 : vector<8x20xf32>, vector<8x20xf32> -> vector<16x20xf32>
    %cst_8 = arith.constant dense<0.000000e+00> : vector<16x20xf32>
    %122 = tpu.matmul %121, %4, %cst_8 {dimension_numbers = #tpu.dot_dimension_numbers<[1], [0], [0], [1], [0, 0, 1, 1], [], []>} : vector<16x20xf32>, vector<20x20xf32>, vector<16x20xf32> -> vector<16x20xf32>
    %123 = vector.broadcast %5 : vector<1x20xf32> to vector<16x20xf32>
    %124 = arith.addf %122, %123 : vector<16x20xf32>
    %125 = arith.addf %0, %124 : vector<16x20xf32>
    %cst_9 = arith.constant dense<0.000000e+00> : vector<16xf32>
    %126 = vector.multi_reduction <add>, %125, %cst_9 [1] : vector<16x20xf32> to vector<16xf32>
    %127 = vector.shape_cast %126 : vector<16xf32> to vector<16x1xf32>
    %cst_10 = arith.constant 2.000000e+01 : f32
    %128 = vector.broadcast %cst_10 : f32 to vector<16x1xf32>
    %129 = arith.divf %127, %128 : vector<16x1xf32>
    %130 = vector.broadcast %129 : vector<16x1xf32> to vector<16x20xf32>
    %131 = arith.subf %125, %130 : vector<16x20xf32>
    %132 = arith.mulf %131, %131 : vector<16x20xf32>
    %cst_11 = arith.constant dense<0.000000e+00> : vector<16xf32>
    %133 = vector.multi_reduction <add>, %132, %cst_11 [1] : vector<16x20xf32> to vector<16xf32>
    %134 = vector.shape_cast %133 : vector<16xf32> to vector<16x1xf32>
    %cst_12 = arith.constant 2.000000e+01 : f32
    %135 = vector.broadcast %cst_12 : f32 to vector<16x1xf32>
    %136 = arith.divf %134, %135 : vector<16x1xf32>
    %137 = vector.broadcast %129 : vector<16x1xf32> to vector<16x20xf32>
    %138 = arith.subf %125, %137 : vector<16x20xf32>
    %cst_13 = arith.constant 9.99999974E-6 : f32
    %139 = vector.broadcast %cst_13 : f32 to vector<16x1xf32>
    %140 = arith.addf %136, %139 : vector<16x1xf32>
    %141 = math.rsqrt %140 : vector<16x1xf32>
    %142 = vector.broadcast %141 : vector<16x1xf32> to vector<16x20xf32>
    %143 = arith.mulf %138, %142 : vector<16x20xf32>
    %144 = vector.broadcast %6 : vector<1x20xf32> to vector<16x20xf32>
    %145 = arith.mulf %143, %144 : vector<16x20xf32>
    %146 = vector.broadcast %7 : vector<1x20xf32> to vector<16x20xf32>
    %147 = arith.addf %145, %146 : vector<16x20xf32>
    %cst_14 = arith.constant dense<0.000000e+00> : vector<16x32xf32>
    %148 = tpu.matmul %147, %8, %cst_14 {dimension_numbers = #tpu.dot_dimension_numbers<[1], [0], [0], [1], [0, 0, 1, 1], [], []>} : vector<16x20xf32>, vector<20x32xf32>, vector<16x32xf32> -> vector<16x32xf32>
    %149 = vector.broadcast %9 : vector<1x32xf32> to vector<16x32xf32>
    %150 = arith.addf %148, %149 : vector<16x32xf32>
    %cst_15 = arith.constant 5.000000e-01 : f32
    %151 = vector.broadcast %cst_15 : f32 to vector<16x32xf32>
    %152 = arith.mulf %151, %150 : vector<16x32xf32>
    %cst_16 = arith.constant 0.707106769 : f32
    %153 = vector.broadcast %cst_16 : f32 to vector<16x32xf32>
    %154 = arith.mulf %150, %153 : vector<16x32xf32>
    %155 = math.erf %154 : vector<16x32xf32>
    %cst_17 = arith.constant 1.000000e+00 : f32
    %156 = vector.broadcast %cst_17 : f32 to vector<16x32xf32>
    %157 = arith.addf %156, %155 : vector<16x32xf32>
    %158 = arith.mulf %152, %157 : vector<16x32xf32>
    %cst_18 = arith.constant dense<0.000000e+00> : vector<16x20xf32>
    %159 = tpu.matmul %158, %10, %cst_18 {dimension_numbers = #tpu.dot_dimension_numbers<[1], [0], [0], [1], [0, 0, 1, 1], [], []>} : vector<16x32xf32>, vector<32x20xf32>, vector<16x20xf32> -> vector<16x20xf32>
    %160 = vector.broadcast %11 : vector<1x20xf32> to vector<16x20xf32>
    %161 = arith.addf %159, %160 : vector<16x20xf32>
    %162 = arith.addf %147, %161 : vector<16x20xf32>
    %cst_19 = arith.constant dense<0.000000e+00> : vector<16xf32>
    %163 = vector.multi_reduction <add>, %162, %cst_19 [1] : vector<16x20xf32> to vector<16xf32>
    %164 = vector.shape_cast %163 : vector<16xf32> to vector<16x1xf32>
    %cst_20 = arith.constant 2.000000e+01 : f32
    %165 = vector.broadcast %cst_20 : f32 to vector<16x1xf32>
    %166 = arith.divf %164, %165 : vector<16x1xf32>
    %167 = vector.broadcast %166 : vector<16x1xf32> to vector<16x20xf32>
    %168 = arith.subf %162, %167 : vector<16x20xf32>
    %169 = arith.mulf %168, %168 : vector<16x20xf32>
    %cst_21 = arith.constant dense<0.000000e+00> : vector<16xf32>
    %170 = vector.multi_reduction <add>, %169, %cst_21 [1] : vector<16x20xf32> to vector<16xf32>
    %171 = vector.shape_cast %170 : vector<16xf32> to vector<16x1xf32>
    %cst_22 = arith.constant 2.000000e+01 : f32
    %172 = vector.broadcast %cst_22 : f32 to vector<16x1xf32>
    %173 = arith.divf %171, %172 : vector<16x1xf32>
    %174 = vector.broadcast %166 : vector<16x1xf32> to vector<16x20xf32>
    %175 = arith.subf %162, %174 : vector<16x20xf32>
    %cst_23 = arith.constant 9.99999974E-6 : f32
    %176 = vector.broadcast %cst_23 : f32 to vector<16x1xf32>
    %177 = arith.addf %173, %176 : vector<16x1xf32>
    %178 = math.rsqrt %177 : vector<16x1xf32>
    %179 = vector.broadcast %178 : vector<16x1xf32> to vector<16x20xf32>
    %180 = arith.mulf %175, %179 : vector<16x20xf32>
    %181 = vector.broadcast %12 : vector<1x20xf32> to vector<16x20xf32>
    %182 = arith.mulf %180, %181 : vector<16x20xf32>
    %183 = vector.broadcast %13 : vector<1x20xf32> to vector<16x20xf32>
    %184 = arith.addf %182, %183 : vector<16x20xf32>
    %c0_24 = arith.constant 0 : index
    %c0_25 = arith.constant 0 : index
    %185 = vector.load %arg3[%c0_24, %c0_25] : memref<16x20xf32, #tpu.memory_space<vmem>>, vector<16x20xf32>
    tpu.vector_store %arg3[%c0_24, %c0_25], %184 {strides = array<i32>} : memref<16x20xf32, #tpu.memory_space<vmem>>, vector<16x20xf32>,
    return
  }
  func.func @transform_0(%arg0: i32) -> (i32, i32) {
    %c0_i32 = arith.constant 0 : i32
    %c0_i32_0 = arith.constant 0 : i32
    %c0_i32_1 = arith.constant 0 : i32
    return %c0_i32, %c0_i32_0 : i32, i32
  }
  func.func @transform_1(%arg0: i32) -> (i32, i32) {
    %c0_i32 = arith.constant 0 : i32
    %c0_i32_0 = arith.constant 0 : i32
    %c0_i32_1 = arith.constant 0 : i32
    return %c0_i32, %c0_i32_0 : i32, i32
  }
  func.func @transform_2(%arg0: i32) -> (i32, i32) {
    %c0_i32 = arith.constant 0 : i32
    %c0_i32_0 = arith.constant 0 : i32
    %c0_i32_1 = arith.constant 0 : i32
    return %c0_i32, %c0_i32_0 : i32, i32
  }
}

</mosaic_0001>

<llo_original>
// kernel: tpu_custom_call.1
$region0: #{tpu_custom_call.1}
  #allocation0 [shape = 'u32[]', space=smem, size = 0x4, offset = 0x4, fixed_abs, tag = 'smem constant byte address 0x4 - core index']
  #allocation1 [shape = 'u32[144,128]{1,0:T(1,128)}', space=vmem, size = 0x12000, scoped, tag = 'internal scratch']
  %s0 = inlined_call_operand.hbm [shape: f32[16,20], index: 0, kind: input, shape index: {}]
  %s1 = inlined_call_operand.hbm [shape: f32[112,128], index: 1, kind: input, shape index: {}]
  %s2 = inlined_call_operand.hbm [shape: f32[16,20], index: 2, kind: output, shape index: {}]
  %s3 = sld [smem:[#allocation0]]
  $region26: #{tpu_custom_call.1} parent=0
    _
  %s5 = ssub.s32 1, %s3
  %s6 = scalar_select 0, %s5, %s3
  $region1: #{tpu_custom_call.1} parent=0
    #allocation2 [shape = 'u8[8192]{0}', space=vmem, size = 0x2000, scoped, tag = 'input window, operand 0, single buffered']
    #allocation3 [shape = 's32[1]{0}', space=sflag, size = 0x4, scoped, tag = 'scoped memory for tpu_custom_call.1']
    #allocation4 [shape = 's32[1]{0}', space=sflag, size = 0x4, scoped, tag = 'scoped memory for tpu_custom_call.1']
    #allocation5 [shape = 'u8[57344]{0}', space=vmem, size = 0xe000, scoped, tag = 'input window, operand 1, single buffered']
    #allocation6 [shape = 's32[1]{0}', space=sflag, size = 0x4, scoped, tag = 'scoped memory for tpu_custom_call.1']
    #allocation7 [shape = 'u8[8192]{0}', space=vmem, size = 0x2000, scoped, tag = 'output window, operand 0, single buffered']
    %7 = vsyncpa [#allocation3], 0
    %8 = vsyncpa [#allocation6], 0
    %9 = vsyncpa [#allocation4], 0
    // Predicated region
    $region2: #{tpu_custom_call.1} parent=1 // pred_check
      _
    $region3: #{tpu_custom_call.1} parent=1 // pred_check_branch
      %11 = sbr.rel (0) target = $region5
    $region4: #{tpu_custom_call.1} parent=1 // pred_region
      %s13 = ssub.s32 256, 256
      %14 = vsyncadd [#allocation3], %s13
      %s15 = sshll.u32 [#allocation2], 4
      %s16 = int_to_ptr.vmem [resolvable:$true] %s15
      %21 = dma.hbm_to_vmem [thread:$0]  %s0, 256, %s16, [#allocation3], 128, 128, 8
    $region5: #{tpu_custom_call.1} parent=1 // pred_fallthru
      _
    // Predicated region
    $region6: #{tpu_custom_call.1} parent=1 // pred_check
      _
    $region7: #{tpu_custom_call.1} parent=1 // pred_check_branch
      %23 = sbr.rel (0) target = $region9
    $region8: #{tpu_custom_call.1} parent=1 // pred_region
      %s25 = ssub.s32 1792, 1792
      %26 = vsyncadd [#allocation6], %s25
      %s27 = sshll.u32 [#allocation5], 4
      %s28 = int_to_ptr.vmem [resolvable:$true] %s27
      %33 = dma.hbm_to_vmem [thread:$0]  %s1, 1792, %s28, [#allocation6], 128, 128, 8
    $region9: #{tpu_custom_call.1} parent=1 // pred_fallthru
      _
    // Predicated region
    $region10: #{tpu_custom_call.1} parent=1 // pred_check
      _
    $region11: #{tpu_custom_call.1} parent=1 // pred_check_branch
      %35 = sbr.rel (0) target = $region13
    $region12: #{tpu_custom_call.1} parent=1 // pred_region
      %36 = dma.done [#allocation3], 256
    $region13: #{tpu_custom_call.1} parent=1 // pred_fallthru
      _
    // Predicated region
    $region14: #{tpu_custom_call.1} parent=1 // pred_check
      _
    $region15: #{tpu_custom_call.1} parent=1 // pred_check_branch
      %38 = sbr.rel (0) target = $region17
    $region16: #{tpu_custom_call.1} parent=1 // pred_region
      %39 = dma.done [#allocation6], 1792
    $region17: #{tpu_custom_call.1} parent=1 // pred_fallthru
      _
    %v40 = vld [vmem:[#allocation2] sm:$0xff]
    %v41 = vld [vmem:[#allocation2 + $0x8] sm:$0xff]
    %v42 = vld [vmem:[#allocation5] sm:$0xff]
    %v43 = vld [vmem:[#allocation5 + $0x8] sm:$0xff]
    %v44 = vld [vmem:[#allocation5 + $0x10] sm:$0xff]
    %v45 = vld [vmem:[#allocation5 + $0x18] sm:$0xff]
    %v46 = vld [vmem:[#allocation5 + $0x20] sm:$0xff]
    %v47 = vld [vmem:[#allocation5 + $0x28] sm:$0xff]
    %v48 = vld [vmem:[#allocation5 + $0x30] sm:$0xff]
    %v49 = vld [vmem:[#allocation5 + $0x38] sm:$0xff]
    %v50 = vld [vmem:[#allocation5 + $0x40] sm:$0xff]
    %v51 = vld [vmem:[#allocation5 + $0x48] sm:$0xff]
    %v52 = vld [vmem:[#allocation5 + $0x50] sm:$0xff]
    %v53 = vld [vmem:[#allocation5 + $0x58] sm:$0xff]
    %v54 = vld [vmem:[#allocation5 + $0x60] sm:$0xff]
    %v55 = vld [vmem:[#allocation5 + $0x68] sm:$0xff]
    %v56 = vlaneseq
    %v57 = vshrl.u32 %v56, 7
    %v58 = vsub.s32 4, %v57
    %v59 = vrot.slane %v44, %v58
    %vm60 = vcmask 162816
    %v62 = vsel %vm60, %v40, 0
    %v65 = vsel %vm60, %v41, 0
    %vm67 = vcmask 1043456
    %v69 = vsel %vm67, %v44, 0
    %71 = vmatprep.subr.mxu0 0.0
    %72 = vmatpush1.msra.mxu0 %v42
    %73 = vmatprep.subr.mxu0 0.0
    %74 = vmatpush1.msra.mxu0 %v43
    %75 = vmatprep.subr.mxu0 0.0
    %76 = vmatpush1.msra.mxu0 %v69
    %77 = vmatprep.subr.mxu0 0.0
    %78 = vmatpush1.msra.mxu0 0.0
    %79 = vmatprep.subr.mxu0 0.0
    %80 = vmatpush1.msra.mxu0 0.0
    %81 = vmatprep.subr.mxu0 0.0
    %82 = vmatpush1.msra.mxu0 0.0
    %83 = vmatprep.subr.mxu0 0.0
    %84 = vmatpush1.msra.mxu0 0.0
    %85 = vmatprep.subr.mxu0 0.0
    %86 = vmatpush1.msra.mxu0 0.0
    %87 = vmatprep.subr.mxu0 0.0
    %88 = vmatpush1.msra.mxu0 0.0
    %89 = vmatprep.subr.mxu0 0.0
    %90 = vmatpush1.msra.mxu0 0.0
    %91 = vmatprep.subr.mxu0 0.0
    %92 = vmatpush1.msra.mxu0 0.0
    %93 = vmatprep.subr.mxu0 0.0
    %94 = vmatpush1.msra.mxu0 0.0
    %95 = vmatprep.subr.mxu0 0.0
    %96 = vmatpush1.msra.mxu0 0.0
    %97 = vmatprep.subr.mxu0 0.0
    %98 = vmatpush1.msra.mxu0 0.0
    %99 = vmatprep.subr.mxu0 0.0
    %100 = vmatpush1.msra.mxu0 0.0
    %101 = vmatprep.subr.mxu0 0.0
    %102 = vmatpush1.msra.mxu0 0.0
    %103 = vmatprep.subr.mxu0 0.0
    %104 = vmatpush1.msra.mxu0 0.0
    %105 = vmatprep.subr.mxu0 0.0
    %106 = vmatpush1.msra.mxu0 0.0
    %107 = vmatprep.subr.mxu0 0.0
    %108 = vmatpush1.msra.mxu0 0.0
    %109 = vmatprep.subr.mxu0 0.0
    %110 = vmatpush1.msra.mxu0 0.0
    %111 = vmatprep.subr.mxu0 0.0
    %112 = vmatpush1.msra.mxu0 0.0
    %113 = vmatprep.subr.mxu0 0.0
    %114 = vmatpush1.msra.mxu0 0.0
    %115 = vmatprep.subr.mxu0 0.0
    %116 = vmatpush1.msra.mxu0 0.0
    %117 = vmatprep.subr.mxu0 0.0
    %118 = vmatpush1.msra.mxu0 0.0
    %119 = vmatprep.subr.mxu0 0.0
    %120 = vmatpush1.msra.mxu0 0.0
    %121 = vmatprep.subr.mxu0 0.0
    %122 = vmatpush1.msra.mxu0 0.0
    %123 = vmatprep.subr.mxu0 0.0
    %124 = vmatpush1.msra.mxu0 0.0
    %125 = vmatprep.subr.mxu0 0.0
    %126 = vmatpush1.msra.mxu0 0.0
    %127 = vmatprep.subr.mxu0 0.0
    %128 = vmatpush1.msra.mxu0 0.0
    %129 = vmatprep.subr.mxu0 0.0
    %130 = vmatpush1.msra.mxu0 0.0
    %131 = vmatprep.subr.mxu0 0.0
    %132 = vmatpush1.msra.mxu0 0.0
    %133 = vmatprep.subr.mxu0 0.0
    %134 = vmatpush1.msra.mxu0 0.0
    %135 = vmatprep.mubr.f32.mxu0 0.0
    %136 = vmatmul.mubr.f32.gmra.mrb[0].mxu0 %v62
    %v137 = vpop.f32.mrb[0].mxu0
    %v138 = vadd.f32 %v59, %v137
    %v139 = vpop.f32.mrb[0].mxu0
    %140 = vmatprep.mubr.f32.mxu0 0.0
    %141 = vmatmul.mubr.f32.gmra.mrb[0].mxu0 %v65
    %v142 = vpop.f32.mrb[0].mxu0
    %v143 = vadd.f32 %v59, %v142
    %v144 = vpop.f32.mrb[0].mxu0
    %145 = vdwg.mxu0
    %147 = vrot.lane.b32.xlu0 %v138, 124
    %v148 = vpop.permute.xlu0 %147
    %149 = vrot.lane.b32.xlu0 %v138, 120
    %v150 = vpop.permute.xlu0 %149
    %151 = vrot.lane.b32.xlu0 %v138, 116
    %v152 = vpop.permute.xlu0 %151
    %153 = vrot.lane.b32.xlu0 %v138, 112
    %v154 = vpop.permute.xlu0 %153
    %156 = vrot.lane.b32.xlu0 %v143, 124
    %v157 = vpop.permute.xlu0 %156
    %158 = vrot.lane.b32.xlu0 %v143, 120
    %v159 = vpop.permute.xlu0 %158
    %160 = vrot.lane.b32.xlu0 %v143, 116
    %v161 = vpop.permute.xlu0 %160
    %162 = vrot.lane.b32.xlu0 %v143, 112
    %v163 = vpop.permute.xlu0 %162
    %164 = vrot.lane.b32.xlu0 %v138, 108
    %v165 = vpop.permute.xlu0 %164
    %vm166 = vcmask 31744
    %v167 = vsel %vm166, %v138, 0
    %v169 = vsel %vm166, %v165, 0
    %171 = vmatprep.subr.mxu0 0.0
    %172 = vmatpush1.xpose.msra.mxu0 %v169
    %173 = vmatprep.subr.mxu0 0.0
    %174 = vmatpush1.xpose.msra.mxu0 0.0
    %175 = vmatprep.subr.mxu0 0.0
    %176 = vmatpush1.xpose.msra.mxu0 0.0
    %177 = vmatprep.subr.mxu0 0.0
    %178 = vmatpush1.xpose.msra.mxu0 0.0
    %179 = vmatprep.subr.mxu0 0.0
    %180 = vmatpush1.xpose.msra.mxu0 0.0
    %181 = vmatprep.subr.mxu0 0.0
    %182 = vmatpush1.xpose.msra.mxu0 0.0
    %183 = vmatprep.subr.mxu0 0.0
    %184 = vmatpush1.xpose.msra.mxu0 0.0
    %185 = vmatprep.subr.mxu0 0.0
    %186 = vmatpush1.xpose.msra.mxu0 0.0
    %187 = vmatprep.subr.mxu0 0.0
    %188 = vmatpush1.xpose.msra.mxu0 0.0
    %189 = vmatprep.subr.mxu0 0.0
    %190 = vmatpush1.xpose.msra.mxu0 0.0
    %191 = vmatprep.subr.mxu0 0.0
    %192 = vmatpush1.xpose.msra.mxu0 0.0
    %193 = vmatprep.subr.mxu0 0.0
    %194 = vmatpush1.xpose.msra.mxu0 0.0
    %195 = vmatprep.subr.mxu0 0.0
    %196 = vmatpush1.xpose.msra.mxu0 0.0
    %197 = vmatprep.subr.mxu0 0.0
    %198 = vmatpush1.xpose.msra.mxu0 0.0
    %199 = vmatprep.subr.mxu0 0.0
    %200 = vmatpush1.xpose.msra.mxu0 0.0
    %201 = vmatprep.subr.mxu0 0.0
    %202 = vmatpush1.xpose.msra.mxu0 0.0
    %203 = vmatprep.subr.mxu0 0.0
    %204 = vmatpush1.xpose.msra.mxu0 0.0
    %205 = vmatprep.subr.mxu0 0.0
    %206 = vmatpush1.xpose.msra.mxu0 0.0
    %207 = vmatprep.subr.mxu0 0.0
    %208 = vmatpush1.xpose.msra.mxu0 0.0
    %209 = vmatprep.subr.mxu0 0.0
    %210 = vmatpush1.xpose.msra.mxu0 0.0
    %211 = vmatprep.subr.mxu0 0.0
    %212 = vmatpush1.xpose.msra.mxu0 0.0
    %213 = vmatprep.subr.mxu0 0.0
    %214 = vmatpush1.xpose.msra.mxu0 0.0
    %215 = vmatprep.subr.mxu0 0.0
    %216 = vmatpush1.xpose.msra.mxu0 0.0
    %217 = vmatprep.subr.mxu0 0.0
    %218 = vmatpush1.xpose.msra.mxu0 0.0
    %219 = vmatprep.subr.mxu0 0.0
    %220 = vmatpush1.xpose.msra.mxu0 0.0
    %221 = vmatprep.subr.mxu0 0.0
    %222 = vmatpush1.xpose.msra.mxu0 0.0
    %223 = vmatprep.subr.mxu0 0.0
    %224 = vmatpush1.xpose.msra.mxu0 0.0
    %225 = vmatprep.subr.mxu0 0.0
    %226 = vmatpush1.xpose.msra.mxu0 0.0
    %227 = vmatprep.subr.mxu0 0.0
    %228 = vmatpush1.xpose.msra.mxu0 0.0
    %229 = vmatprep.subr.mxu0 0.0
    %230 = vmatpush1.xpose.msra.mxu0 0.0
    %231 = vmatprep.subr.mxu0 0.0
    %232 = vmatpush1.xpose.msra.mxu0 0.0
    %233 = vmatprep.subr.mxu0 0.0
    %234 = vmatpush1.xpose.msra.mxu0 0.0
    %235 = vmatprep.mubr.f32.mxu0 0.0
    %236 = vmatmul.mubr.f32.gmra.mrb[0].mxu0 %v167
    %v237 = vpop.f32.mrb[0].mxu0
    %v238 = vadd.f32 0.0, %v237
    %v239 = vpop.f32.mrb[0].mxu0
    %240 = vdwg.mxu0
    %241 = vrot.lane.b32.xlu0 %v148, 108
    %v242 = vpop.permute.xlu0 %241
    %v243 = vsel %vm166, %v148, 0
    %v245 = vsel %vm166, %v242, 0
    %247 = vmatprep.subr.mxu0 0.0
    %248 = vmatpush1.xpose.msra.mxu0 %v245
    %249 = vmatprep.subr.mxu0 0.0
    %250 = vmatpush1.xpose.msra.mxu0 0.0
    %251 = vmatprep.subr.mxu0 0.0
    %252 = vmatpush1.xpose.msra.mxu0 0.0
    %253 = vmatprep.subr.mxu0 0.0
    %254 = vmatpush1.xpose.msra.mxu0 0.0
    %255 = vmatprep.subr.mxu0 0.0
    %256 = vmatpush1.xpose.msra.mxu0 0.0
    %257 = vmatprep.subr.mxu0 0.0
    %258 = vmatpush1.xpose.msra.mxu0 0.0
    %259 = vmatprep.subr.mxu0 0.0
    %260 = vmatpush1.xpose.msra.mxu0 0.0
    %261 = vmatprep.subr.mxu0 0.0
    %262 = vmatpush1.xpose.msra.mxu0 0.0
    %263 = vmatprep.subr.mxu0 0.0
    %264 = vmatpush1.xpose.msra.mxu0 0.0
    %265 = vmatprep.subr.mxu0 0.0
    %266 = vmatpush1.xpose.msra.mxu0 0.0
    %267 = vmatprep.subr.mxu0 0.0
    %268 = vmatpush1.xpose.msra.mxu0 0.0
    %269 = vmatprep.subr.mxu0 0.0
    %270 = vmatpush1.xpose.msra.mxu0 0.0
    %271 = vmatprep.subr.mxu0 0.0
    %272 = vmatpush1.xpose.msra.mxu0 0.0
    %273 = vmatprep.subr.mxu0 0.0
    %274 = vmatpush1.xpose.msra.mxu0 0.0
    %275 = vmatprep.subr.mxu0 0.0
    %276 = vmatpush1.xpose.msra.mxu0 0.0
    %277 = vmatprep.subr.mxu0 0.0
    %278 = vmatpush1.xpose.msra.mxu0 0.0
    %279 = vmatprep.subr.mxu0 0.0
    %280 = vmatpush1.xpose.msra.mxu0 0.0
    %281 = vmatprep.subr.mxu0 0.0
    %282 = vmatpush1.xpose.msra.mxu0 0.0
    %283 = vmatprep.subr.mxu0 0.0
    %284 = vmatpush1.xpose.msra.mxu0 0.0
    %285 = vmatprep.subr.mxu0 0.0
    %286 = vmatpush1.xpose.msra.mxu0 0.0
    %287 = vmatprep.subr.mxu0 0.0
    %288 = vmatpush1.xpose.msra.mxu0 0.0
    %289 = vmatprep.subr.mxu0 0.0
    %290 = vmatpush1.xpose.msra.mxu0 0.0
    %291 = vmatprep.subr.mxu0 0.0
    %292 = vmatpush1.xpose.msra.mxu0 0.0
    %293 = vmatprep.subr.mxu0 0.0
    %294 = vmatpush1.xpose.msra.mxu0 0.0
    %295 = vmatprep.subr.mxu0 0.0
    %296 = vmatpush1.xpose.msra.mxu0 0.0
    %297 = vmatprep.subr.mxu0 0.0
    %298 = vmatpush1.xpose.msra.mxu0 0.0
    %299 = vmatprep.subr.mxu0 0.0
    %300 = vmatpush1.xpose.msra.mxu0 0.0
    %301 = vmatprep.subr.mxu0 0.0
    %302 = vmatpush1.xpose.msra.mxu0 0.0
    %303 = vmatprep.subr.mxu0 0.0
    %304 = vmatpush1.xpose.msra.mxu0 0.0
    %305 = vmatprep.subr.mxu0 0.0
    %306 = vmatpush1.xpose.msra.mxu0 0.0
    %307 = vmatprep.subr.mxu0 0.0
    %308 = vmatpush1.xpose.msra.mxu0 0.0
    %309 = vmatprep.subr.mxu0 0.0
    %310 = vmatpush1.xpose.msra.mxu0 0.0
    %311 = vmatprep.mubr.f32.mxu0 0.0
    %312 = vmatmul.mubr.f32.gmra.mrb[0].mxu0 %v243
    %v313 = vpop.f32.mrb[0].mxu0
    %v314 = vadd.f32 0.0, %v313
    %v315 = vpop.f32.mrb[0].mxu0
    %316 = vdwg.mxu0
    %317 = vrot.lane.b32.xlu0 %v150, 108
    %v318 = vpop.permute.xlu0 %317
    %v319 = vsel %vm166, %v150, 0
    %v321 = vsel %vm166, %v318, 0
    %323 = vmatprep.subr.mxu0 0.0
    %324 = vmatpush1.xpose.msra.mxu0 %v321
    %325 = vmatprep.subr.mxu0 0.0
    %326 = vmatpush1.xpose.msra.mxu0 0.0
    %327 = vmatprep.subr.mxu0 0.0
    %328 = vmatpush1.xpose.msra.mxu0 0.0
    %329 = vmatprep.subr.mxu0 0.0
    %330 = vmatpush1.xpose.msra.mxu0 0.0
    %331 = vmatprep.subr.mxu0 0.0
    %332 = vmatpush1.xpose.msra.mxu0 0.0
    %333 = vmatprep.subr.mxu0 0.0
    %334 = vmatpush1.xpose.msra.mxu0 0.0
    %335 = vmatprep.subr.mxu0 0.0
    %336 = vmatpush1.xpose.msra.mxu0 0.0
    %337 = vmatprep.subr.mxu0 0.0
    %338 = vmatpush1.xpose.msra.mxu0 0.0
    %339 = vmatprep.subr.mxu0 0.0
    %340 = vmatpush1.xpose.msra.mxu0 0.0
    %341 = vmatprep.subr.mxu0 0.0
    %342 = vmatpush1.xpose.msra.mxu0 0.0
    %343 = vmatprep.subr.mxu0 0.0
    %344 = vmatpush1.xpose.msra.mxu0 0.0
    %345 = vmatprep.subr.mxu0 0.0
    %346 = vmatpush1.xpose.msra.mxu0 0.0
    %347 = vmatprep.subr.mxu0 0.0
    %348 = vmatpush1.xpose.msra.mxu0 0.0
    %349 = vmatprep.subr.mxu0 0.0
    %350 = vmatpush1.xpose.msra.mxu0 0.0
    %351 = vmatprep.subr.mxu0 0.0
    %352 = vmatpush1.xpose.msra.mxu0 0.0
    %353 = vmatprep.subr.mxu0 0.0
    %354 = vmatpush1.xpose.msra.mxu0 0.0
    %355 = vmatprep.subr.mxu0 0.0
    %356 = vmatpush1.xpose.msra.mxu0 0.0
    %357 = vmatprep.subr.mxu0 0.0
    %358 = vmatpush1.xpose.msra.mxu0 0.0
    %359 = vmatprep.subr.mxu0 0.0
    %360 = vmatpush1.xpose.msra.mxu0 0.0
    %361 = vmatprep.subr.mxu0 0.0
    %362 = vmatpush1.xpose.msra.mxu0 0.0
    %363 = vmatprep.subr.mxu0 0.0
    %364 = vmatpush1.xpose.msra.mxu0 0.0
    %365 = vmatprep.subr.mxu0 0.0
    %366 = vmatpush1.xpose.msra.mxu0 0.0
    %367 = vmatprep.subr.mxu0 0.0
    %368 = vmatpush1.xpose.msra.mxu0 0.0
    %369 = vmatprep.subr.mxu0 0.0
    %370 = vmatpush1.xpose.msra.mxu0 0.0
    %371 = vmatprep.subr.mxu0 0.0
    %372 = vmatpush1.xpose.msra.mxu0 0.0
    %373 = vmatprep.subr.mxu0 0.0
    %374 = vmatpush1.xpose.msra.mxu0 0.0
    %375 = vmatprep.subr.mxu0 0.0
    %376 = vmatpush1.xpose.msra.mxu0 0.0
    %377 = vmatprep.subr.mxu0 0.0
    %378 = vmatpush1.xpose.msra.mxu0 0.0
    %379 = vmatprep.subr.mxu0 0.0
    %380 = vmatpush1.xpose.msra.mxu0 0.0
    %381 = vmatprep.subr.mxu0 0.0
    %382 = vmatpush1.xpose.msra.mxu0 0.0
    %383 = vmatprep.subr.mxu0 0.0
    %384 = vmatpush1.xpose.msra.mxu0 0.0
    %385 = vmatprep.subr.mxu0 0.0
    %386 = vmatpush1.xpose.msra.mxu0 0.0
    %387 = vmatprep.mubr.f32.mxu0 0.0
    %388 = vmatmul.mubr.f32.gmra.mrb[0].mxu0 %v319
    %v389 = vpop.f32.mrb[0].mxu0
    %v390 = vadd.f32 0.0, %v389
    %v391 = vpop.f32.mrb[0].mxu0
    %392 = vdwg.mxu0
    %393 = vrot.lane.b32.xlu0 %v152, 108
    %v394 = vpop.permute.xlu0 %393
    %v395 = vsel %vm166, %v152, 0
    %v397 = vsel %vm166, %v394, 0
    %399 = vmatprep.subr.mxu0 0.0
    %400 = vmatpush1.xpose.msra.mxu0 %v397
    %401 = vmatprep.subr.mxu0 0.0
    %402 = vmatpush1.xpose.msra.mxu0 0.0
    %403 = vmatprep.subr.mxu0 0.0
    %404 = vmatpush1.xpose.msra.mxu0 0.0
    %405 = vmatprep.subr.mxu0 0.0
    %406 = vmatpush1.xpose.msra.mxu0 0.0
    %407 = vmatprep.subr.mxu0 0.0
    %408 = vmatpush1.xpose.msra.mxu0 0.0
    %409 = vmatprep.subr.mxu0 0.0
    %410 = vmatpush1.xpose.msra.mxu0 0.0
    %411 = vmatprep.subr.mxu0 0.0
    %412 = vmatpush1.xpose.msra.mxu0 0.0
    %413 = vmatprep.subr.mxu0 0.0
    %414 = vmatpush1.xpose.msra.mxu0 0.0
    %415 = vmatprep.subr.mxu0 0.0
    %416 = vmatpush1.xpose.msra.mxu0 0.0
    %417 = vmatprep.subr.mxu0 0.0
    %418 = vmatpush1.xpose.msra.mxu0 0.0
    %419 = vmatprep.subr.mxu0 0.0
    %420 = vmatpush1.xpose.msra.mxu0 0.0
    %421 = vmatprep.subr.mxu0 0.0
    %422 = vmatpush1.xpose.msra.mxu0 0.0
    %423 = vmatprep.subr.mxu0 0.0
    %424 = vmatpush1.xpose.msra.mxu0 0.0
    %425 = vmatprep.subr.mxu0 0.0
    %426 = vmatpush1.xpose.msra.mxu0 0.0
    %427 = vmatprep.subr.mxu0 0.0
    %428 = vmatpush1.xpose.msra.mxu0 0.0
    %429 = vmatprep.subr.mxu0 0.0
    %430 = vmatpush1.xpose.msra.mxu0 0.0
    %431 = vmatprep.subr.mxu0 0.0
    %432 = vmatpush1.xpose.msra.mxu0 0.0
    %433 = vmatprep.subr.mxu0 0.0
    %434 = vmatpush1.xpose.msra.mxu0 0.0
    %435 = vmatprep.subr.mxu0 0.0
    %436 = vmatpush1.xpose.msra.mxu0 0.0
    %437 = vmatprep.subr.mxu0 0.0
    %438 = vmatpush1.xpose.msra.mxu0 0.0
    %439 = vmatprep.subr.mxu0 0.0
    %440 = vmatpush1.xpose.msra.mxu0 0.0
    %441 = vmatprep.subr.mxu0 0.0
    %442 = vmatpush1.xpose.msra.mxu0 0.0
    %443 = vmatprep.subr.mxu0 0.0
    %444 = vmatpush1.xpose.msra.mxu0 0.0
    %445 = vmatprep.subr.mxu0 0.0
    %446 = vmatpush1.xpose.msra.mxu0 0.0
    %447 = vmatprep.subr.mxu0 0.0
    %448 = vmatpush1.xpose.msra.mxu0 0.0
    %449 = vmatprep.subr.mxu0 0.0
    %450 = vmatpush1.xpose.msra.mxu0 0.0
    %451 = vmatprep.subr.mxu0 0.0
    %452 = vmatpush1.xpose.msra.mxu0 0.0
    %453 = vmatprep.subr.mxu0 0.0
    %454 = vmatpush1.xpose.msra.mxu0 0.0
    %455 = vmatprep.subr.mxu0 0.0
    %456 = vmatpush1.xpose.msra.mxu0 0.0
    %457 = vmatprep.subr.mxu0 0.0
    %458 = vmatpush1.xpose.msra.mxu0 0.0
    %459 = vmatprep.subr.mxu0 0.0
    %460 = vmatpush1.xpose.msra.mxu0 0.0
    %461 = vmatprep.subr.mxu0 0.0
    %462 = vmatpush1.xpose.msra.mxu0 0.0
    %463 = vmatprep.mubr.f32.mxu0 0.0
    %464 = vmatmul.mubr.f32.gmra.mrb[0].mxu0 %v395
    %v465 = vpop.f32.mrb[0].mxu0
    %v466 = vadd.f32 0.0, %v465
    %v467 = vpop.f32.mrb[0].mxu0
    %468 = vdwg.mxu0
    %469 = vrot.lane.b32.xlu0 %v154, 108
    %v470 = vpop.permute.xlu0 %469
    %v471 = vsel %vm166, %v154, 0
    %v473 = vsel %vm166, %v470, 0
    %475 = vmatprep.subr.mxu0 0.0
    %476 = vmatpush1.xpose.msra.mxu0 %v473
    %477 = vmatprep.subr.mxu0 0.0
    %478 = vmatpush1.xpose.msra.mxu0 0.0
    %479 = vmatprep.subr.mxu0 0.0
    %480 = vmatpush1.xpose.msra.mxu0 0.0
    %481 = vmatprep.subr.mxu0 0.0
    %482 = vmatpush1.xpose.msra.mxu0 0.0
    %483 = vmatprep.subr.mxu0 0.0
    %484 = vmatpush1.xpose.msra.mxu0 0.0
    %485 = vmatprep.subr.mxu0 0.0
    %486 = vmatpush1.xpose.msra.mxu0 0.0
    %487 = vmatprep.subr.mxu0 0.0
    %488 = vmatpush1.xpose.msra.mxu0 0.0
    %489 = vmatprep.subr.mxu0 0.0
    %490 = vmatpush1.xpose.msra.mxu0 0.0
    %491 = vmatprep.subr.mxu0 0.0
    %492 = vmatpush1.xpose.msra.mxu0 0.0
    %493 = vmatprep.subr.mxu0 0.0
    %494 = vmatpush1.xpose.msra.mxu0 0.0
    %495 = vmatprep.subr.mxu0 0.0
    %496 = vmatpush1.xpose.msra.mxu0 0.0
    %497 = vmatprep.subr.mxu0 0.0
    %498 = vmatpush1.xpose.msra.mxu0 0.0
    %499 = vmatprep.subr.mxu0 0.0
    %500 = vmatpush1.xpose.msra.mxu0 0.0
    %501 = vmatprep.subr.mxu0 0.0
    %502 = vmatpush1.xpose.msra.mxu0 0.0
    %503 = vmatprep.subr.mxu0 0.0
    %504 = vmatpush1.xpose.msra.mxu0 0.0
    %505 = vmatprep.subr.mxu0 0.0
    %506 = vmatpush1.xpose.msra.mxu0 0.0
    %507 = vmatprep.subr.mxu0 0.0
    %508 = vmatpush1.xpose.msra.mxu0 0.0
    %509 = vmatprep.subr.mxu0 0.0
    %510 = vmatpush1.xpose.msra.mxu0 0.0
    %511 = vmatprep.subr.mxu0 0.0
    %512 = vmatpush1.xpose.msra.mxu0 0.0
    %513 = vmatprep.subr.mxu0 0.0
    %514 = vmatpush1.xpose.msra.mxu0 0.0
    %515 = vmatprep.subr.mxu0 0.0
    %516 = vmatpush1.xpose.msra.mxu0 0.0
    %517 = vmatprep.subr.mxu0 0.0
    %518 = vmatpush1.xpose.msra.mxu0 0.0
    %519 = vmatprep.subr.mxu0 0.0
    %520 = vmatpush1.xpose.msra.mxu0 0.0
    %521 = vmatprep.subr.mxu0 0.0
    %522 = vmatpush1.xpose.msra.mxu0 0.0
    %523 = vmatprep.subr.mxu0 0.0
    %524 = vmatpush1.xpose.msra.mxu0 0.0
    %525 = vmatprep.subr.mxu0 0.0
    %526 = vmatpush1.xpose.msra.mxu0 0.0
    %527 = vmatprep.subr.mxu0 0.0
    %528 = vmatpush1.xpose.msra.mxu0 0.0
    %529 = vmatprep.subr.mxu0 0.0
    %530 = vmatpush1.xpose.msra.mxu0 0.0
    %531 = vmatprep.subr.mxu0 0.0
    %532 = vmatpush1.xpose.msra.mxu0 0.0
    %533 = vmatprep.subr.mxu0 0.0
    %534 = vmatpush1.xpose.msra.mxu0 0.0
    %535 = vmatprep.subr.mxu0 0.0
    %536 = vmatpush1.xpose.msra.mxu0 0.0
    %537 = vmatprep.subr.mxu0 0.0
    %538 = vmatpush1.xpose.msra.mxu0 0.0
    %539 = vmatprep.mubr.f32.mxu0 0.0
    %540 = vmatmul.mubr.f32.gmra.mrb[0].mxu0 %v471
    %v541 = vpop.f32.mrb[0].mxu0
    %v542 = vadd.f32 0.0, %v541
    %v543 = vpop.f32.mrb[0].mxu0
    %544 = vdwg.mxu0
    %545 = vrot.lane.b32.xlu0 %v143, 108
    %v546 = vpop.permute.xlu0 %545
    %v547 = vsel %vm166, %v143, 0
    %v549 = vsel %vm166, %v546, 0
    %551 = vmatprep.subr.mxu0 0.0
    %552 = vmatpush1.xpose.msra.mxu0 %v549
    %553 = vmatprep.subr.mxu0 0.0
    %554 = vmatpush1.xpose.msra.mxu0 0.0
    %555 = vmatprep.subr.mxu0 0.0
    %556 = vmatpush1.xpose.msra.mxu0 0.0
    %557 = vmatprep.subr.mxu0 0.0
    %558 = vmatpush1.xpose.msra.mxu0 0.0
    %559 = vmatprep.subr.mxu0 0.0
    %560 = vmatpush1.xpose.msra.mxu0 0.0
    %561 = vmatprep.subr.mxu0 0.0
    %562 = vmatpush1.xpose.msra.mxu0 0.0
    %563 = vmatprep.subr.mxu0 0.0
    %564 = vmatpush1.xpose.msra.mxu0 0.0
    %565 = vmatprep.subr.mxu0 0.0
    %566 = vmatpush1.xpose.msra.mxu0 0.0
    %567 = vmatprep.subr.mxu0 0.0
    %568 = vmatpush1.xpose.msra.mxu0 0.0
    %569 = vmatprep.subr.mxu0 0.0
    %570 = vmatpush1.xpose.msra.mxu0 0.0
    %571 = vmatprep.subr.mxu0 0.0
    %572 = vmatpush1.xpose.msra.mxu0 0.0
    %573 = vmatprep.subr.mxu0 0.0
    %574 = vmatpush1.xpose.msra.mxu0 0.0
    %575 = vmatprep.subr.mxu0 0.0
    %576 = vmatpush1.xpose.msra.mxu0 0.0
    %577 = vmatprep.subr.mxu0 0.0
    %578 = vmatpush1.xpose.msra.mxu0 0.0
    %579 = vmatprep.subr.mxu0 0.0
    %580 = vmatpush1.xpose.msra.mxu0 0.0
    %581 = vmatprep.subr.mxu0 0.0
    %582 = vmatpush1.xpose.msra.mxu0 0.0
    %583 = vmatprep.subr.mxu0 0.0
    %584 = vmatpush1.xpose.msra.mxu0 0.0
    %585 = vmatprep.subr.mxu0 0.0
    %586 = vmatpush1.xpose.msra.mxu0 0.0
    %587 = vmatprep.subr.mxu0 0.0
    %588 = vmatpush1.xpose.msra.mxu0 0.0
    %589 = vmatprep.subr.mxu0 0.0
    %590 = vmatpush1.xpose.msra.mxu0 0.0
    %591 = vmatprep.subr.mxu0 0.0
    %592 = vmatpush1.xpose.msra.mxu0 0.0
    %593 = vmatprep.subr.mxu0 0.0
    %594 = vmatpush1.xpose.msra.mxu0 0.0
    %595 = vmatprep.subr.mxu0 0.0
    %596 = vmatpush1.xpose.msra.mxu0 0.0
    %597 = vmatprep.subr.mxu0 0.0
    %598 = vmatpush1.xpose.msra.mxu0 0.0
    %599 = vmatprep.subr.mxu0 0.0
    %600 = vmatpush1.xpose.msra.mxu0 0.0
    %601 = vmatprep.subr.mxu0 0.0
    %602 = vmatpush1.xpose.msra.mxu0 0.0
    %603 = vmatprep.subr.mxu0 0.0
    %604 = vmatpush1.xpose.msra.mxu0 0.0
    %605 = vmatprep.subr.mxu0 0.0
    %606 = vmatpush1.xpose.msra.mxu0 0.0
    %607 = vmatprep.subr.mxu0 0.0
    %608 = vmatpush1.xpose.msra.mxu0 0.0
    %609 = vmatprep.subr.mxu0 0.0
    %610 = vmatpush1.xpose.msra.mxu0 0.0
    %611 = vmatprep.subr.mxu0 0.0
    %612 = vmatpush1.xpose.msra.mxu0 0.0
    %613 = vmatprep.subr.mxu0 0.0
    %614 = vmatpush1.xpose.msra.mxu0 0.0
    %615 = vmatprep.mubr.f32.mxu0 0.0
    %616 = vmatmul.mubr.f32.gmra.mrb[0].mxu0 %v547
    %v617 = vpop.f32.mrb[0].mxu0
    %v618 = vadd.f32 0.0, %v617
    %v619 = vpop.f32.mrb[0].mxu0
    %620 = vdwg.mxu0
    %621 = vrot.lane.b32.xlu0 %v157, 108
    %v622 = vpop.permute.xlu0 %621
    %v623 = vsel %vm166, %v157, 0
    %v625 = vsel %vm166, %v622, 0
    %627 = vmatprep.subr.mxu0 0.0
    %628 = vmatpush1.xpose.msra.mxu0 %v625
    %629 = vmatprep.subr.mxu0 0.0
    %630 = vmatpush1.xpose.msra.mxu0 0.0
    %631 = vmatprep.subr.mxu0 0.0
    %632 = vmatpush1.xpose.msra.mxu0 0.0
    %633 = vmatprep.subr.mxu0 0.0
    %634 = vmatpush1.xpose.msra.mxu0 0.0
    %635 = vmatprep.subr.mxu0 0.0
    %636 = vmatpush1.xpose.msra.mxu0 0.0
    %637 = vmatprep.subr.mxu0 0.0
    %638 = vmatpush1.xpose.msra.mxu0 0.0
    %639 = vmatprep.subr.mxu0 0.0
    %640 = vmatpush1.xpose.msra.mxu0 0.0
    %641 = vmatprep.subr.mxu0 0.0
    %642 = vmatpush1.xpose.msra.mxu0 0.0
    %643 = vmatprep.subr.mxu0 0.0
    %644 = vmatpush1.xpose.msra.mxu0 0.0
    %645 = vmatprep.subr.mxu0 0.0
    %646 = vmatpush1.xpose.msra.mxu0 0.0
    %647 = vmatprep.subr.mxu0 0.0
    %648 = vmatpush1.xpose.msra.mxu0 0.0
    %649 = vmatprep.subr.mxu0 0.0
    %650 = vmatpush1.xpose.msra.mxu0 0.0
    %651 = vmatprep.subr.mxu0 0.0
    %652 = vmatpush1.xpose.msra.mxu0 0.0
    %653 = vmatprep.subr.mxu0 0.0
    %654 = vmatpush1.xpose.msra.mxu0 0.0
    %655 = vmatprep.subr.mxu0 0.0
    %656 = vmatpush1.xpose.msra.mxu0 0.0
    %657 = vmatprep.subr.mxu0 0.0
    %658 = vmatpush1.xpose.msra.mxu0 0.0
    %659 = vmatprep.subr.mxu0 0.0
    %660 = vmatpush1.xpose.msra.mxu0 0.0
    %661 = vmatprep.subr.mxu0 0.0
    %662 = vmatpush1.xpose.msra.mxu0 0.0
    %663 = vmatprep.subr.mxu0 0.0
    %664 = vmatpush1.xpose.msra.mxu0 0.0
    %665 = vmatprep.subr.mxu0 0.0
    %666 = vmatpush1.xpose.msra.mxu0 0.0
    %667 = vmatprep.subr.mxu0 0.0
    %668 = vmatpush1.xpose.msra.mxu0 0.0
    %669 = vmatprep.subr.mxu0 0.0
    %670 = vmatpush1.xpose.msra.mxu0 0.0
    %671 = vmatprep.subr.mxu0 0.0
    %672 = vmatpush1.xpose.msra.mxu0 0.0
    %673 = vmatprep.subr.mxu0 0.0
    %674 = vmatpush1.xpose.msra.mxu0 0.0
    %675 = vmatprep.subr.mxu0 0.0
    %676 = vmatpush1.xpose.msra.mxu0 0.0
    %677 = vmatprep.subr.mxu0 0.0
    %678 = vmatpush1.xpose.msra.mxu0 0.0
    %679 = vmatprep.subr.mxu0 0.0
    %680 = vmatpush1.xpose.msra.mxu0 0.0
    %681 = vmatprep.subr.mxu0 0.0
    %682 = vmatpush1.xpose.msra.mxu0 0.0
    %683 = vmatprep.subr.mxu0 0.0
    %684 = vmatpush1.xpose.msra.mxu0 0.0
    %685 = vmatprep.subr.mxu0 0.0
    %686 = vmatpush1.xpose.msra.mxu0 0.0
    %687 = vmatprep.subr.mxu0 0.0
    %688 = vmatpush1.xpose.msra.mxu0 0.0
    %689 = vmatprep.subr.mxu0 0.0
    %690 = vmatpush1.xpose.msra.mxu0 0.0
    %691 = vmatprep.mubr.f32.mxu0 0.0
    %692 = vmatmul.mubr.f32.gmra.mrb[0].mxu0 %v623
    %v693 = vpop.f32.mrb[0].mxu0
    %v694 = vadd.f32 0.0, %v693
    %v695 = vpop.f32.mrb[0].mxu0
    %696 = vdwg.mxu0
    %697 = vrot.lane.b32.xlu0 %v159, 108
    %v698 = vpop.permute.xlu0 %697
    %v699 = vsel %vm166, %v159, 0
    %v701 = vsel %vm166, %v698, 0
    %703 = vmatprep.subr.mxu0 0.0
    %704 = vmatpush1.xpose.msra.mxu0 %v701
    %705 = vmatprep.subr.mxu0 0.0
    %706 = vmatpush1.xpose.msra.mxu0 0.0
    %707 = vmatprep.subr.mxu0 0.0
    %708 = vmatpush1.xpose.msra.mxu0 0.0
    %709 = vmatprep.subr.mxu0 0.0
    %710 = vmatpush1.xpose.msra.mxu0 0.0
    %711 = vmatprep.subr.mxu0 0.0
    %712 = vmatpush1.xpose.msra.mxu0 0.0
    %713 = vmatprep.subr.mxu0 0.0
    %714 = vmatpush1.xpose.msra.mxu0 0.0
    %715 = vmatprep.subr.mxu0 0.0
    %716 = vmatpush1.xpose.msra.mxu0 0.0
    %717 = vmatprep.subr.mxu0 0.0
    %718 = vmatpush1.xpose.msra.mxu0 0.0
    %719 = vmatprep.subr.mxu0 0.0
    %720 = vmatpush1.xpose.msra.mxu0 0.0
    %721 = vmatprep.subr.mxu0 0.0
    %722 = vmatpush1.xpose.msra.mxu0 0.0
    %723 = vmatprep.subr.mxu0 0.0
    %724 = vmatpush1.xpose.msra.mxu0 0.0
    %725 = vmatprep.subr.mxu0 0.0
    %726 = vmatpush1.xpose.msra.mxu0 0.0
    %727 = vmatprep.subr.mxu0 0.0
    %728 = vmatpush1.xpose.msra.mxu0 0.0
    %729 = vmatprep.subr.mxu0 0.0
    %730 = vmatpush1.xpose.msra.mxu0 0.0
    %731 = vmatprep.subr.mxu0 0.0
    %732 = vmatpush1.xpose.msra.mxu0 0.0
    %733 = vmatprep.subr.mxu0 0.0
    %734 = vmatpush1.xpose.msra.mxu0 0.0
    %735 = vmatprep.subr.mxu0 0.0
    %736 = vmatpush1.xpose.msra.mxu0 0.0
    %737 = vmatprep.subr.mxu0 0.0
    %738 = vmatpush1.xpose.msra.mxu0 0.0
    %739 = vmatprep.subr.mxu0 0.0
    %740 = vmatpush1.xpose.msra.mxu0 0.0
    %741 = vmatprep.subr.mxu0 0.0
    %742 = vmatpush1.xpose.msra.mxu0 0.0
    %743 = vmatprep.subr.mxu0 0.0
    %744 = vmatpush1.xpose.msra.mxu0 0.0
    %745 = vmatprep.subr.mxu0 0.0
    %746 = vmatpush1.xpose.msra.mxu0 0.0
    %747 = vmatprep.subr.mxu0 0.0
    %748 = vmatpush1.xpose.msra.mxu0 0.0
    %749 = vmatprep.subr.mxu0 0.0
    %750 = vmatpush1.xpose.msra.mxu0 0.0
    %751 = vmatprep.subr.mxu0 0.0
    %752 = vmatpush1.xpose.msra.mxu0 0.0
    %753 = vmatprep.subr.mxu0 0.0
    %754 = vmatpush1.xpose.msra.mxu0 0.0
    %755 = vmatprep.subr.mxu0 0.0
    %756 = vmatpush1.xpose.msra.mxu0 0.0
    %757 = vmatprep.subr.mxu0 0.0
    %758 = vmatpush1.xpose.msra.mxu0 0.0
    %759 = vmatprep.subr.mxu0 0.0
    %760 = vmatpush1.xpose.msra.mxu0 0.0
    %761 = vmatprep.subr.mxu0 0.0
    %762 = vmatpush1.xpose.msra.mxu0 0.0
    %763 = vmatprep.subr.mxu0 0.0
    %764 = vmatpush1.xpose.msra.mxu0 0.0
    %765 = vmatprep.subr.mxu0 0.0
    %766 = vmatpush1.xpose.msra.mxu0 0.0
    %767 = vmatprep.mubr.f32.mxu0 0.0
    %768 = vmatmul.mubr.f32.gmra.mrb[0].mxu0 %v699
    %v769 = vpop.f32.mrb[0].mxu0
    %v770 = vadd.f32 0.0, %v769
    %v771 = vpop.f32.mrb[0].mxu0
    %772 = vdwg.mxu0
    %773 = vrot.lane.b32.xlu0 %v161, 108
    %v774 = vpop.permute.xlu0 %773
    %v775 = vsel %vm166, %v161, 0
    %v777 = vsel %vm166, %v774, 0
    %779 = vmatprep.subr.mxu0 0.0
    %780 = vmatpush1.xpose.msra.mxu0 %v777
    %781 = vmatprep.subr.mxu0 0.0
    %782 = vmatpush1.xpose.msra.mxu0 0.0
    %783 = vmatprep.subr.mxu0 0.0
    %784 = vmatpush1.xpose.msra.mxu0 0.0
    %785 = vmatprep.subr.mxu0 0.0
    %786 = vmatpush1.xpose.msra.mxu0 0.0
    %787 = vmatprep.subr.mxu0 0.0
    %788 = vmatpush1.xpose.msra.mxu0 0.0
    %789 = vmatprep.subr.mxu0 0.0
    %790 = vmatpush1.xpose.msra.mxu0 0.0
    %791 = vmatprep.subr.mxu0 0.0
    %792 = vmatpush1.xpose.msra.mxu0 0.0
    %793 = vmatprep.subr.mxu0 0.0
    %794 = vmatpush1.xpose.msra.mxu0 0.0
    %795 = vmatprep.subr.mxu0 0.0
    %796 = vmatpush1.xpose.msra.mxu0 0.0
    %797 = vmatprep.subr.mxu0 0.0
    %798 = vmatpush1.xpose.msra.mxu0 0.0
    %799 = vmatprep.subr.mxu0 0.0
    %800 = vmatpush1.xpose.msra.mxu0 0.0
    %801 = vmatprep.subr.mxu0 0.0
    %802 = vmatpush1.xpose.msra.mxu0 0.0
    %803 = vmatprep.subr.mxu0 0.0
    %804 = vmatpush1.xpose.msra.mxu0 0.0
    %805 = vmatprep.subr.mxu0 0.0
    %806 = vmatpush1.xpose.msra.mxu0 0.0
    %807 = vmatprep.subr.mxu0 0.0
    %808 = vmatpush1.xpose.msra.mxu0 0.0
    %809 = vmatprep.subr.mxu0 0.0
    %810 = vmatpush1.xpose.msra.mxu0 0.0
    %811 = vmatprep.subr.mxu0 0.0
    %812 = vmatpush1.xpose.msra.mxu0 0.0
    %813 = vmatprep.subr.mxu0 0.0
    %814 = vmatpush1.xpose.msra.mxu0 0.0
    %815 = vmatprep.subr.mxu0 0.0
    %816 = vmatpush1.xpose.msra.mxu0 0.0
    %817 = vmatprep.subr.mxu0 0.0
    %818 = vmatpush1.xpose.msra.mxu0 0.0
    %819 = vmatprep.subr.mxu0 0.0
    %820 = vmatpush1.xpose.msra.mxu0 0.0
    %821 = vmatprep.subr.mxu0 0.0
    %822 = vmatpush1.xpose.msra.mxu0 0.0
    %823 = vmatprep.subr.mxu0 0.0
    %824 = vmatpush1.xpose.msra.mxu0 0.0
    %825 = vmatprep.subr.mxu0 0.0
    %826 = vmatpush1.xpose.msra.mxu0 0.0
    %827 = vmatprep.subr.mxu0 0.0
    %828 = vmatpush1.xpose.msra.mxu0 0.0
    %829 = vmatprep.subr.mxu0 0.0
    %830 = vmatpush1.xpose.msra.mxu0 0.0
    %831 = vmatprep.subr.mxu0 0.0
    %832 = vmatpush1.xpose.msra.mxu0 0.0
    %833 = vmatprep.subr.mxu0 0.0
    %834 = vmatpush1.xpose.msra.mxu0 0.0
    %835 = vmatprep.subr.mxu0 0.0
    %836 = vmatpush1.xpose.msra.mxu0 0.0
    %837 = vmatprep.subr.mxu0 0.0
    %838 = vmatpush1.xpose.msra.mxu0 0.0
    %839 = vmatprep.subr.mxu0 0.0
    %840 = vmatpush1.xpose.msra.mxu0 0.0
    %841 = vmatprep.subr.mxu0 0.0
    %842 = vmatpush1.xpose.msra.mxu0 0.0
    %843 = vmatprep.mubr.f32.mxu0 0.0
    %844 = vmatmul.mubr.f32.gmra.mrb[0].mxu0 %v775
    %v845 = vpop.f32.mrb[0].mxu0
    %v846 = vadd.f32 0.0, %v845
    %v847 = vpop.f32.mrb[0].mxu0
    %848 = vdwg.mxu0
    %849 = vrot.lane.b32.xlu0 %v163, 108
    %v850 = vpop.permute.xlu0 %849
    %v851 = vsel %vm166, %v163, 0
    %v853 = vsel %vm166, %v850, 0
    %855 = vmatprep.subr.mxu0 0.0
    %856 = vmatpush1.xpose.msra.mxu0 %v853
    %857 = vmatprep.subr.mxu0 0.0
    %858 = vmatpush1.xpose.msra.mxu0 0.0
    %859 = vmatprep.subr.mxu0 0.0
    %860 = vmatpush1.xpose.msra.mxu0 0.0
    %861 = vmatprep.subr.mxu0 0.0
    %862 = vmatpush1.xpose.msra.mxu0 0.0
    %863 = vmatprep.subr.mxu0 0.0
    %864 = vmatpush1.xpose.msra.mxu0 0.0
    %865 = vmatprep.subr.mxu0 0.0
    %866 = vmatpush1.xpose.msra.mxu0 0.0
    %867 = vmatprep.subr.mxu0 0.0
    %868 = vmatpush1.xpose.msra.mxu0 0.0
    %869 = vmatprep.subr.mxu0 0.0
    %870 = vmatpush1.xpose.msra.mxu0 0.0
    %871 = vmatprep.subr.mxu0 0.0
    %872 = vmatpush1.xpose.msra.mxu0 0.0
    %873 = vmatprep.subr.mxu0 0.0
    %874 = vmatpush1.xpose.msra.mxu0 0.0
    %875 = vmatprep.subr.mxu0 0.0
    %876 = vmatpush1.xpose.msra.mxu0 0.0
    %877 = vmatprep.subr.mxu0 0.0
    %878 = vmatpush1.xpose.msra.mxu0 0.0
    %879 = vmatprep.subr.mxu0 0.0
    %880 = vmatpush1.xpose.msra.mxu0 0.0
    %881 = vmatprep.subr.mxu0 0.0
    %882 = vmatpush1.xpose.msra.mxu0 0.0
    %883 = vmatprep.subr.mxu0 0.0
    %884 = vmatpush1.xpose.msra.mxu0 0.0
    %885 = vmatprep.subr.mxu0 0.0
    %886 = vmatpush1.xpose.msra.mxu0 0.0
    %887 = vmatprep.subr.mxu0 0.0
    %888 = vmatpush1.xpose.msra.mxu0 0.0
    %889 = vmatprep.subr.mxu0 0.0
    %890 = vmatpush1.xpose.msra.mxu0 0.0
    %891 = vmatprep.subr.mxu0 0.0
    %892 = vmatpush1.xpose.msra.mxu0 0.0
    %893 = vmatprep.subr.mxu0 0.0
    %894 = vmatpush1.xpose.msra.mxu0 0.0
    %895 = vmatprep.subr.mxu0 0.0
    %896 = vmatpush1.xpose.msra.mxu0 0.0
    %897 = vmatprep.subr.mxu0 0.0
    %898 = vmatpush1.xpose.msra.mxu0 0.0
    %899 = vmatprep.subr.mxu0 0.0
    %900 = vmatpush1.xpose.msra.mxu0 0.0
    %901 = vmatprep.subr.mxu0 0.0
    %902 = vmatpush1.xpose.msra.mxu0 0.0
    %903 = vmatprep.subr.mxu0 0.0
    %904 = vmatpush1.xpose.msra.mxu0 0.0
    %905 = vmatprep.subr.mxu0 0.0
    %906 = vmatpush1.xpose.msra.mxu0 0.0
    %907 = vmatprep.subr.mxu0 0.0
    %908 = vmatpush1.xpose.msra.mxu0 0.0
    %909 = vmatprep.subr.mxu0 0.0
    %910 = vmatpush1.xpose.msra.mxu0 0.0
    %911 = vmatprep.subr.mxu0 0.0
    %912 = vmatpush1.xpose.msra.mxu0 0.0
    %913 = vmatprep.subr.mxu0 0.0
    %914 = vmatpush1.xpose.msra.mxu0 0.0
    %915 = vmatprep.subr.mxu0 0.0
    %916 = vmatpush1.xpose.msra.mxu0 0.0
    %917 = vmatprep.subr.mxu0 0.0
    %918 = vmatpush1.xpose.msra.mxu0 0.0
    %919 = vmatprep.mubr.f32.mxu0 0.0
    %920 = vmatmul.mubr.f32.gmra.mrb[0].mxu0 %v851
    %v921 = vpop.f32.mrb[0].mxu0
    %v922 = vadd.f32 0.0, %v921
    %v923 = vpop.f32.mrb[0].mxu0
    %924 = vdwg.mxu0
    %vm925 = vcmask 64512
    %v926 = vsel %vm925, %v238, -inf
    %927 = vmax.xlane.f32.xlu0 %v926
    %v928 = vpop.xlane.xlu0 %927
    %v929 = vsel %vm925, %v314, -inf
    %930 = vmax.xlane.f32.xlu0 %v929
    %v931 = vpop.xlane.xlu0 %930
    %v932 = vsel %vm925, %v390, -inf
    %933 = vmax.xlane.f32.xlu0 %v932
    %v934 = vpop.xlane.xlu0 %933
    %v935 = vsel %vm925, %v466, -inf
    %936 = vmax.xlane.f32.xlu0 %v935
    %v937 = vpop.xlane.xlu0 %936
    %v938 = vsel %vm925, %v542, -inf
    %939 = vmax.xlane.f32.xlu0 %v938
    %v940 = vpop.xlane.xlu0 %939
    %v941 = vsel %vm925, %v618, -inf
    %942 = vmax.xlane.f32.xlu0 %v941
    %v943 = vpop.xlane.xlu0 %942
    %v944 = vsel %vm925, %v694, -inf
    %945 = vmax.xlane.f32.xlu0 %v944
    %v946 = vpop.xlane.xlu0 %945
    %v947 = vsel %vm925, %v770, -inf
    %948 = vmax.xlane.f32.xlu0 %v947
    %v949 = vpop.xlane.xlu0 %948
    %v950 = vsel %vm925, %v846, -inf
    %951 = vmax.xlane.f32.xlu0 %v950
    %v952 = vpop.xlane.xlu0 %951
    %v953 = vsel %vm925, %v922, -inf
    %954 = vmax.xlane.f32.xlu0 %v953
    %v955 = vpop.xlane.xlu0 %954
    %v956 = vsub.f32 %v238, %v928
    %v957 = vsub.f32 %v314, %v931
    %v958 = vsub.f32 %v390, %v934
    %v959 = vsub.f32 %v466, %v937
    %v960 = vsub.f32 %v542, %v940
    %v961 = vsub.f32 %v618, %v943
    %v962 = vsub.f32 %v694, %v946
    %v963 = vsub.f32 %v770, %v949
    %v964 = vsub.f32 %v846, %v952
    %v965 = vsub.f32 %v922, %v955
    %v966 = vmul.f32 %v956, 1.442695
    %v967 = vpow.pop %v966
    %v968 = vmul.f32 %v957, 1.442695
    %v969 = vpow.pop %v968
    %v970 = vmul.f32 %v958, 1.442695
    %v971 = vpow.pop %v970
    %v972 = vmul.f32 %v959, 1.442695
    %v973 = vpow.pop %v972
    %v974 = vmul.f32 %v960, 1.442695
    %v975 = vpow.pop %v974
    %v976 = vmul.f32 %v961, 1.442695
    %v977 = vpow.pop %v976
    %v978 = vmul.f32 %v962, 1.442695
    %v979 = vpow.pop %v978
    %v980 = vmul.f32 %v963, 1.442695
    %v981 = vpow.pop %v980
    %v982 = vmul.f32 %v964, 1.442695
    %v983 = vpow.pop %v982
    %v984 = vmul.f32 %v965, 1.442695
    %v985 = vpow.pop %v984
    %v986 = vsel %vm925, %v967, 0.0
    %987 = vadd.xlane.f32.xlu0 %v986
    %v988 = vpop.xlane.xlu0 %987
    %v989 = vsel %vm925, %v969, 0.0
    %990 = vadd.xlane.f32.xlu0 %v989
    %v991 = vpop.xlane.xlu0 %990
    %v992 = vsel %vm925, %v971, 0.0
    %993 = vadd.xlane.f32.xlu0 %v992
    %v994 = vpop.xlane.xlu0 %993
    %v995 = vsel %vm925, %v973, 0.0
    %996 = vadd.xlane.f32.xlu0 %v995
    %v997 = vpop.xlane.xlu0 %996
    %v998 = vsel %vm925, %v975, 0.0
    %999 = vadd.xlane.f32.xlu0 %v998
    %v1000 = vpop.xlane.xlu0 %999
    %v1001 = vsel %vm925, %v977, 0.0
    %1002 = vadd.xlane.f32.xlu0 %v1001
    %v1003 = vpop.xlane.xlu0 %1002
    %v1004 = vsel %vm925, %v979, 0.0
    %1005 = vadd.xlane.f32.xlu0 %v1004
    %v1006 = vpop.xlane.xlu0 %1005
    %v1007 = vsel %vm925, %v981, 0.0
    %1008 = vadd.xlane.f32.xlu0 %v1007
    %v1009 = vpop.xlane.xlu0 %1008
    %v1010 = vsel %vm925, %v983, 0.0
    %1011 = vadd.xlane.f32.xlu0 %v1010
    %v1012 = vpop.xlane.xlu0 %1011
    %v1013 = vsel %vm925, %v985, 0.0
    %1014 = vadd.xlane.f32.xlu0 %v1013
    %v1015 = vpop.xlane.xlu0 %1014
    %v1016 = vrcp.pop %v988
    %v1017 = vrcp.pop %v991
    %v1018 = vrcp.pop %v994
    %v1019 = vrcp.pop %v997
    %v1020 = vrcp.pop %v1000
    %v1021 = vrcp.pop %v1003
    %v1022 = vrcp.pop %v1006
    %v1023 = vrcp.pop %v1009
    %v1024 = vrcp.pop %v1012
    %v1025 = vrcp.pop %v1015
    %v1026 = vmul.f32 %v988, %v1016
    %v1027 = vmul.f32 %v991, %v1017
    %v1028 = vmul.f32 %v994, %v1018
    %v1029 = vmul.f32 %v997, %v1019
    %v1030 = vmul.f32 %v1000, %v1020
    %v1031 = vmul.f32 %v1003, %v1021
    %v1032 = vmul.f32 %v1006, %v1022
    %v1033 = vmul.f32 %v1009, %v1023
    %v1034 = vmul.f32 %v1012, %v1024
    %v1035 = vmul.f32 %v1015, %v1025
    %v1036 = vsub.f32 2.0, %v1026
    %v1037 = vsub.f32 2.0, %v1027
    %v1038 = vsub.f32 2.0, %v1028
    %v1039 = vsub.f32 2.0, %v1029
    %v1040 = vsub.f32 2.0, %v1030
    %v1041 = vsub.f32 2.0, %v1031
    %v1042 = vsub.f32 2.0, %v1032
    %v1043 = vsub.f32 2.0, %v1033
    %v1044 = vsub.f32 2.0, %v1034
    %v1045 = vsub.f32 2.0, %v1035
    %v1046 = vmul.f32 %v1016, %v1036
    %v1047 = vmul.f32 %v1017, %v1037
    %v1048 = vmul.f32 %v1018, %v1038
    %v1049 = vmul.f32 %v1019, %v1039
    %v1050 = vmul.f32 %v1020, %v1040
    %v1051 = vmul.f32 %v1021, %v1041
    %v1052 = vmul.f32 %v1022, %v1042
    %v1053 = vmul.f32 %v1023, %v1043
    %v1054 = vmul.f32 %v1024, %v1044
    %v1055 = vmul.f32 %v1025, %v1045
    %v1056 = vmul.f32 %v967, %v1046
    %v1057 = vmul.f32 %v969, %v1047
    %v1058 = vmul.f32 %v971, %v1048
    %v1059 = vmul.f32 %v973, %v1049
    %v1060 = vmul.f32 %v975, %v1050
    %v1061 = vmul.f32 %v977, %v1051
    %v1062 = vmul.f32 %v979, %v1052
    %v1063 = vmul.f32 %v981, %v1053
    %v1064 = vmul.f32 %v983, %v1054
    %v1065 = vmul.f32 %v985, %v1055
    %1066 = vrot.lane.b32.xlu0 %v138, 88
    %v1067 = vpop.permute.xlu0 %1066
    %v1070 = vsel %vm925, %v1056, 0
    %1072 = vmatprep.subr.mxu0 0.0
    %1073 = vmatpush1.msra.mxu0 %v1067
    %1074 = vmatprep.subr.mxu0 0.0
    %1075 = vmatpush1.msra.mxu0 0.0
    %1076 = vmatprep.subr.mxu0 0.0
    %1077 = vmatpush1.msra.mxu0 0.0
    %1078 = vmatprep.subr.mxu0 0.0
    %1079 = vmatpush1.msra.mxu0 0.0
    %1080 = vmatprep.subr.mxu0 0.0
    %1081 = vmatpush1.msra.mxu0 0.0
    %1082 = vmatprep.subr.mxu0 0.0
    %1083 = vmatpush1.msra.mxu0 0.0
    %1084 = vmatprep.subr.mxu0 0.0
    %1085 = vmatpush1.msra.mxu0 0.0
    %1086 = vmatprep.subr.mxu0 0.0
    %1087 = vmatpush1.msra.mxu0 0.0
    %1088 = vmatprep.subr.mxu0 0.0
    %1089 = vmatpush1.msra.mxu0 0.0
    %1090 = vmatprep.subr.mxu0 0.0
    %1091 = vmatpush1.msra.mxu0 0.0
    %1092 = vmatprep.subr.mxu0 0.0
    %1093 = vmatpush1.msra.mxu0 0.0
    %1094 = vmatprep.subr.mxu0 0.0
    %1095 = vmatpush1.msra.mxu0 0.0
    %1096 = vmatprep.subr.mxu0 0.0
    %1097 = vmatpush1.msra.mxu0 0.0
    %1098 = vmatprep.subr.mxu0 0.0
    %1099 = vmatpush1.msra.mxu0 0.0
    %1100 = vmatprep.subr.mxu0 0.0
    %1101 = vmatpush1.msra.mxu0 0.0
    %1102 = vmatprep.subr.mxu0 0.0
    %1103 = vmatpush1.msra.mxu0 0.0
    %1104 = vmatprep.subr.mxu0 0.0
    %1105 = vmatpush1.msra.mxu0 0.0
    %1106 = vmatprep.subr.mxu0 0.0
    %1107 = vmatpush1.msra.mxu0 0.0
    %1108 = vmatprep.subr.mxu0 0.0
    %1109 = vmatpush1.msra.mxu0 0.0
    %1110 = vmatprep.subr.mxu0 0.0
    %1111 = vmatpush1.msra.mxu0 0.0
    %1112 = vmatprep.subr.mxu0 0.0
    %1113 = vmatpush1.msra.mxu0 0.0
    %1114 = vmatprep.subr.mxu0 0.0
    %1115 = vmatpush1.msra.mxu0 0.0
    %1116 = vmatprep.subr.mxu0 0.0
    %1117 = vmatpush1.msra.mxu0 0.0
    %1118 = vmatprep.subr.mxu0 0.0
    %1119 = vmatpush1.msra.mxu0 0.0
    %1120 = vmatprep.subr.mxu0 0.0
    %1121 = vmatpush1.msra.mxu0 0.0
    %1122 = vmatprep.subr.mxu0 0.0
    %1123 = vmatpush1.msra.mxu0 0.0
    %1124 = vmatprep.subr.mxu0 0.0
    %1125 = vmatpush1.msra.mxu0 0.0
    %1126 = vmatprep.subr.mxu0 0.0
    %1127 = vmatpush1.msra.mxu0 0.0
    %1128 = vmatprep.subr.mxu0 0.0
    %1129 = vmatpush1.msra.mxu0 0.0
    %1130 = vmatprep.subr.mxu0 0.0
    %1131 = vmatpush1.msra.mxu0 0.0
    %1132 = vmatprep.subr.mxu0 0.0
    %1133 = vmatpush1.msra.mxu0 0.0
    %1134 = vmatprep.subr.mxu0 0.0
    %1135 = vmatpush1.msra.mxu0 0.0
    %1136 = vmatprep.mubr.f32.mxu0 0.0
    %1137 = vmatmul.mubr.f32.gmra.mrb[0].mxu0 %v1070
    %v1138 = vpop.f32.mrb[0].mxu0
    %v1139 = vadd.f32 0.0, %v1138
    %v1140 = vpop.f32.mrb[0].mxu0
    %1141 = vdwg.mxu0
    %1142 = vrot.lane.b32.xlu0 %v148, 88
    %v1143 = vpop.permute.xlu0 %1142
    %v1146 = vsel %vm925, %v1057, 0
    %1148 = vmatprep.subr.mxu0 0.0
    %1149 = vmatpush1.msra.mxu0 %v1143
    %1150 = vmatprep.subr.mxu0 0.0
    %1151 = vmatpush1.msra.mxu0 0.0
    %1152 = vmatprep.subr.mxu0 0.0
    %1153 = vmatpush1.msra.mxu0 0.0
    %1154 = vmatprep.subr.mxu0 0.0
    %1155 = vmatpush1.msra.mxu0 0.0
    %1156 = vmatprep.subr.mxu0 0.0
    %1157 = vmatpush1.msra.mxu0 0.0
    %1158 = vmatprep.subr.mxu0 0.0
    %1159 = vmatpush1.msra.mxu0 0.0
    %1160 = vmatprep.subr.mxu0 0.0
    %1161 = vmatpush1.msra.mxu0 0.0
    %1162 = vmatprep.subr.mxu0 0.0
    %1163 = vmatpush1.msra.mxu0 0.0
    %1164 = vmatprep.subr.mxu0 0.0
    %1165 = vmatpush1.msra.mxu0 0.0
    %1166 = vmatprep.subr.mxu0 0.0
    %1167 = vmatpush1.msra.mxu0 0.0
    %1168 = vmatprep.subr.mxu0 0.0
    %1169 = vmatpush1.msra.mxu0 0.0
    %1170 = vmatprep.subr.mxu0 0.0
    %1171 = vmatpush1.msra.mxu0 0.0
    %1172 = vmatprep.subr.mxu0 0.0
    %1173 = vmatpush1.msra.mxu0 0.0
    %1174 = vmatprep.subr.mxu0 0.0
    %1175 = vmatpush1.msra.mxu0 0.0
    %1176 = vmatprep.subr.mxu0 0.0
    %1177 = vmatpush1.msra.mxu0 0.0
    %1178 = vmatprep.subr.mxu0 0.0
    %1179 = vmatpush1.msra.mxu0 0.0
    %1180 = vmatprep.subr.mxu0 0.0
    %1181 = vmatpush1.msra.mxu0 0.0
    %1182 = vmatprep.subr.mxu0 0.0
    %1183 = vmatpush1.msra.mxu0 0.0
    %1184 = vmatprep.subr.mxu0 0.0
    %1185 = vmatpush1.msra.mxu0 0.0
    %1186 = vmatprep.subr.mxu0 0.0
    %1187 = vmatpush1.msra.mxu0 0.0
    %1188 = vmatprep.subr.mxu0 0.0
    %1189 = vmatpush1.msra.mxu0 0.0
    %1190 = vmatprep.subr.mxu0 0.0
    %1191 = vmatpush1.msra.mxu0 0.0
    %1192 = vmatprep.subr.mxu0 0.0
    %1193 = vmatpush1.msra.mxu0 0.0
    %1194 = vmatprep.subr.mxu0 0.0
    %1195 = vmatpush1.msra.mxu0 0.0
    %1196 = vmatprep.subr.mxu0 0.0
    %1197 = vmatpush1.msra.mxu0 0.0
    %1198 = vmatprep.subr.mxu0 0.0
    %1199 = vmatpush1.msra.mxu0 0.0
    %1200 = vmatprep.subr.mxu0 0.0
    %1201 = vmatpush1.msra.mxu0 0.0
    %1202 = vmatprep.subr.mxu0 0.0
    %1203 = vmatpush1.msra.mxu0 0.0
    %1204 = vmatprep.subr.mxu0 0.0
    %1205 = vmatpush1.msra.mxu0 0.0
    %1206 = vmatprep.subr.mxu0 0.0
    %1207 = vmatpush1.msra.mxu0 0.0
    %1208 = vmatprep.subr.mxu0 0.0
    %1209 = vmatpush1.msra.mxu0 0.0
    %1210 = vmatprep.subr.mxu0 0.0
    %1211 = vmatpush1.msra.mxu0 0.0
    %1212 = vmatprep.mubr.f32.mxu0 0.0
    %1213 = vmatmul.mubr.f32.gmra.mrb[0].mxu0 %v1146
    %v1214 = vpop.f32.mrb[0].mxu0
    %v1215 = vadd.f32 0.0, %v1214
    %v1216 = vpop.f32.mrb[0].mxu0
    %1217 = vdwg.mxu0
    %1218 = vrot.lane.b32.xlu0 %v150, 88
    %v1219 = vpop.permute.xlu0 %1218
    %v1222 = vsel %vm925, %v1058, 0
    %1224 = vmatprep.subr.mxu0 0.0
    %1225 = vmatpush1.msra.mxu0 %v1219
    %1226 = vmatprep.subr.mxu0 0.0
    %1227 = vmatpush1.msra.mxu0 0.0
    %1228 = vmatprep.subr.mxu0 0.0
    %1229 = vmatpush1.msra.mxu0 0.0
    %1230 = vmatprep.subr.mxu0 0.0
    %1231 = vmatpush1.msra.mxu0 0.0
    %1232 = vmatprep.subr.mxu0 0.0
    %1233 = vmatpush1.msra.mxu0 0.0
    %1234 = vmatprep.subr.mxu0 0.0
    %1235 = vmatpush1.msra.mxu0 0.0
    %1236 = vmatprep.subr.mxu0 0.0
    %1237 = vmatpush1.msra.mxu0 0.0
    %1238 = vmatprep.subr.mxu0 0.0
    %1239 = vmatpush1.msra.mxu0 0.0
    %1240 = vmatprep.subr.mxu0 0.0
    %1241 = vmatpush1.msra.mxu0 0.0
    %1242 = vmatprep.subr.mxu0 0.0
    %1243 = vmatpush1.msra.mxu0 0.0
    %1244 = vmatprep.subr.mxu0 0.0
    %1245 = vmatpush1.msra.mxu0 0.0
    %1246 = vmatprep.subr.mxu0 0.0
    %1247 = vmatpush1.msra.mxu0 0.0
    %1248 = vmatprep.subr.mxu0 0.0
    %1249 = vmatpush1.msra.mxu0 0.0
    %1250 = vmatprep.subr.mxu0 0.0
    %1251 = vmatpush1.msra.mxu0 0.0
    %1252 = vmatprep.subr.mxu0 0.0
    %1253 = vmatpush1.msra.mxu0 0.0
    %1254 = vmatprep.subr.mxu0 0.0
    %1255 = vmatpush1.msra.mxu0 0.0
    %1256 = vmatprep.subr.mxu0 0.0
    %1257 = vmatpush1.msra.mxu0 0.0
    %1258 = vmatprep.subr.mxu0 0.0
    %1259 = vmatpush1.msra.mxu0 0.0
    %1260 = vmatprep.subr.mxu0 0.0
    %1261 = vmatpush1.msra.mxu0 0.0
    %1262 = vmatprep.subr.mxu0 0.0
    %1263 = vmatpush1.msra.mxu0 0.0
    %1264 = vmatprep.subr.mxu0 0.0
    %1265 = vmatpush1.msra.mxu0 0.0
    %1266 = vmatprep.subr.mxu0 0.0
    %1267 = vmatpush1.msra.mxu0 0.0
    %1268 = vmatprep.subr.mxu0 0.0
    %1269 = vmatpush1.msra.mxu0 0.0
    %1270 = vmatprep.subr.mxu0 0.0
    %1271 = vmatpush1.msra.mxu0 0.0
    %1272 = vmatprep.subr.mxu0 0.0
    %1273 = vmatpush1.msra.mxu0 0.0
    %1274 = vmatprep.subr.mxu0 0.0
    %1275 = vmatpush1.msra.mxu0 0.0
    %1276 = vmatprep.subr.mxu0 0.0
    %1277 = vmatpush1.msra.mxu0 0.0
    %1278 = vmatprep.subr.mxu0 0.0
    %1279 = vmatpush1.msra.mxu0 0.0
    %1280 = vmatprep.subr.mxu0 0.0
    %1281 = vmatpush1.msra.mxu0 0.0
    %1282 = vmatprep.subr.mxu0 0.0
    %1283 = vmatpush1.msra.mxu0 0.0
    %1284 = vmatprep.subr.mxu0 0.0
    %1285 = vmatpush1.msra.mxu0 0.0
    %1286 = vmatprep.subr.mxu0 0.0
    %1287 = vmatpush1.msra.mxu0 0.0
    %1288 = vmatprep.mubr.f32.mxu0 0.0
    %1289 = vmatmul.mubr.f32.gmra.mrb[0].mxu0 %v1222
    %v1290 = vpop.f32.mrb[0].mxu0
    %v1291 = vadd.f32 0.0, %v1290
    %v1292 = vpop.f32.mrb[0].mxu0
    %1293 = vdwg.mxu0
    %1294 = vrot.lane.b32.xlu0 %v152, 88
    %v1295 = vpop.permute.xlu0 %1294
    %v1298 = vsel %vm925, %v1059, 0
    %1300 = vmatprep.subr.mxu0 0.0
    %1301 = vmatpush1.msra.mxu0 %v1295
    %1302 = vmatprep.subr.mxu0 0.0
    %1303 = vmatpush1.msra.mxu0 0.0
    %1304 = vmatprep.subr.mxu0 0.0
    %1305 = vmatpush1.msra.mxu0 0.0
    %1306 = vmatprep.subr.mxu0 0.0
    %1307 = vmatpush1.msra.mxu0 0.0
    %1308 = vmatprep.subr.mxu0 0.0
    %1309 = vmatpush1.msra.mxu0 0.0
    %1310 = vmatprep.subr.mxu0 0.0
    %1311 = vmatpush1.msra.mxu0 0.0
    %1312 = vmatprep.subr.mxu0 0.0
    %1313 = vmatpush1.msra.mxu0 0.0
    %1314 = vmatprep.subr.mxu0 0.0
    %1315 = vmatpush1.msra.mxu0 0.0
    %1316 = vmatprep.subr.mxu0 0.0
    %1317 = vmatpush1.msra.mxu0 0.0
    %1318 = vmatprep.subr.mxu0 0.0
    %1319 = vmatpush1.msra.mxu0 0.0
    %1320 = vmatprep.subr.mxu0 0.0
    %1321 = vmatpush1.msra.mxu0 0.0
    %1322 = vmatprep.subr.mxu0 0.0
    %1323 = vmatpush1.msra.mxu0 0.0
    %1324 = vmatprep.subr.mxu0 0.0
    %1325 = vmatpush1.msra.mxu0 0.0
    %1326 = vmatprep.subr.mxu0 0.0
    %1327 = vmatpush1.msra.mxu0 0.0
    %1328 = vmatprep.subr.mxu0 0.0
    %1329 = vmatpush1.msra.mxu0 0.0
    %1330 = vmatprep.subr.mxu0 0.0
    %1331 = vmatpush1.msra.mxu0 0.0
    %1332 = vmatprep.subr.mxu0 0.0
    %1333 = vmatpush1.msra.mxu0 0.0
    %1334 = vmatprep.subr.mxu0 0.0
    %1335 = vmatpush1.msra.mxu0 0.0
    %1336 = vmatprep.subr.mxu0 0.0
    %1337 = vmatpush1.msra.mxu0 0.0
    %1338 = vmatprep.subr.mxu0 0.0
    %1339 = vmatpush1.msra.mxu0 0.0
    %1340 = vmatprep.subr.mxu0 0.0
    %1341 = vmatpush1.msra.mxu0 0.0
    %1342 = vmatprep.subr.mxu0 0.0
    %1343 = vmatpush1.msra.mxu0 0.0
    %1344 = vmatprep.subr.mxu0 0.0
    %1345 = vmatpush1.msra.mxu0 0.0
    %1346 = vmatprep.subr.mxu0 0.0
    %1347 = vmatpush1.msra.mxu0 0.0
    %1348 = vmatprep.subr.mxu0 0.0
    %1349 = vmatpush1.msra.mxu0 0.0
    %1350 = vmatprep.subr.mxu0 0.0
    %1351 = vmatpush1.msra.mxu0 0.0
    %1352 = vmatprep.subr.mxu0 0.0
    %1353 = vmatpush1.msra.mxu0 0.0
    %1354 = vmatprep.subr.mxu0 0.0
    %1355 = vmatpush1.msra.mxu0 0.0
    %1356 = vmatprep.subr.mxu0 0.0
    %1357 = vmatpush1.msra.mxu0 0.0
    %1358 = vmatprep.subr.mxu0 0.0
    %1359 = vmatpush1.msra.mxu0 0.0
    %1360 = vmatprep.subr.mxu0 0.0
    %1361 = vmatpush1.msra.mxu0 0.0
    %1362 = vmatprep.subr.mxu0 0.0
    %1363 = vmatpush1.msra.mxu0 0.0
    %1364 = vmatprep.mubr.f32.mxu0 0.0
    %1365 = vmatmul.mubr.f32.gmra.mrb[0].mxu0 %v1298
    %v1366 = vpop.f32.mrb[0].mxu0
    %v1367 = vadd.f32 0.0, %v1366
    %v1368 = vpop.f32.mrb[0].mxu0
    %1369 = vdwg.mxu0
    %1370 = vrot.lane.b32.xlu0 %v154, 88
    %v1371 = vpop.permute.xlu0 %1370
    %v1374 = vsel %vm925, %v1060, 0
    %1376 = vmatprep.subr.mxu0 0.0
    %1377 = vmatpush1.msra.mxu0 %v1371
    %1378 = vmatprep.subr.mxu0 0.0
    %1379 = vmatpush1.msra.mxu0 0.0
    %1380 = vmatprep.subr.mxu0 0.0
    %1381 = vmatpush1.msra.mxu0 0.0
    %1382 = vmatprep.subr.mxu0 0.0
    %1383 = vmatpush1.msra.mxu0 0.0
    %1384 = vmatprep.subr.mxu0 0.0
    %1385 = vmatpush1.msra.mxu0 0.0
    %1386 = vmatprep.subr.mxu0 0.0
    %1387 = vmatpush1.msra.mxu0 0.0
    %1388 = vmatprep.subr.mxu0 0.0
    %1389 = vmatpush1.msra.mxu0 0.0
    %1390 = vmatprep.subr.mxu0 0.0
    %1391 = vmatpush1.msra.mxu0 0.0
    %1392 = vmatprep.subr.mxu0 0.0
    %1393 = vmatpush1.msra.mxu0 0.0
    %1394 = vmatprep.subr.mxu0 0.0
    %1395 = vmatpush1.msra.mxu0 0.0
    %1396 = vmatprep.subr.mxu0 0.0
    %1397 = vmatpush1.msra.mxu0 0.0
    %1398 = vmatprep.subr.mxu0 0.0
    %1399 = vmatpush1.msra.mxu0 0.0
    %1400 = vmatprep.subr.mxu0 0.0
    %1401 = vmatpush1.msra.mxu0 0.0
    %1402 = vmatprep.subr.mxu0 0.0
    %1403 = vmatpush1.msra.mxu0 0.0
    %1404 = vmatprep.subr.mxu0 0.0
    %1405 = vmatpush1.msra.mxu0 0.0
    %1406 = vmatprep.subr.mxu0 0.0
    %1407 = vmatpush1.msra.mxu0 0.0
    %1408 = vmatprep.subr.mxu0 0.0
    %1409 = vmatpush1.msra.mxu0 0.0
    %1410 = vmatprep.subr.mxu0 0.0
    %1411 = vmatpush1.msra.mxu0 0.0
    %1412 = vmatprep.subr.mxu0 0.0
    %1413 = vmatpush1.msra.mxu0 0.0
    %1414 = vmatprep.subr.mxu0 0.0
    %1415 = vmatpush1.msra.mxu0 0.0
    %1416 = vmatprep.subr.mxu0 0.0
    %1417 = vmatpush1.msra.mxu0 0.0
    %1418 = vmatprep.subr.mxu0 0.0
    %1419 = vmatpush1.msra.mxu0 0.0
    %1420 = vmatprep.subr.mxu0 0.0
    %1421 = vmatpush1.msra.mxu0 0.0
    %1422 = vmatprep.subr.mxu0 0.0
    %1423 = vmatpush1.msra.mxu0 0.0
    %1424 = vmatprep.subr.mxu0 0.0
    %1425 = vmatpush1.msra.mxu0 0.0
    %1426 = vmatprep.subr.mxu0 0.0
    %1427 = vmatpush1.msra.mxu0 0.0
    %1428 = vmatprep.subr.mxu0 0.0
    %1429 = vmatpush1.msra.mxu0 0.0
    %1430 = vmatprep.subr.mxu0 0.0
    %1431 = vmatpush1.msra.mxu0 0.0
    %1432 = vmatprep.subr.mxu0 0.0
    %1433 = vmatpush1.msra.mxu0 0.0
    %1434 = vmatprep.subr.mxu0 0.0
    %1435 = vmatpush1.msra.mxu0 0.0
    %1436 = vmatprep.subr.mxu0 0.0
    %1437 = vmatpush1.msra.mxu0 0.0
    %1438 = vmatprep.subr.mxu0 0.0
    %1439 = vmatpush1.msra.mxu0 0.0
    %1440 = vmatprep.mubr.f32.mxu0 0.0
    %1441 = vmatmul.mubr.f32.gmra.mrb[0].mxu0 %v1374
    %v1442 = vpop.f32.mrb[0].mxu0
    %v1443 = vadd.f32 0.0, %v1442
    %v1444 = vpop.f32.mrb[0].mxu0
    %1445 = vdwg.mxu0
    %1446 = vrot.lane.b32.xlu0 %v143, 88
    %v1447 = vpop.permute.xlu0 %1446
    %v1450 = vsel %vm925, %v1061, 0
    %1452 = vmatprep.subr.mxu0 0.0
    %1453 = vmatpush1.msra.mxu0 %v1447
    %1454 = vmatprep.subr.mxu0 0.0
    %1455 = vmatpush1.msra.mxu0 0.0
    %1456 = vmatprep.subr.mxu0 0.0
    %1457 = vmatpush1.msra.mxu0 0.0
    %1458 = vmatprep.subr.mxu0 0.0
    %1459 = vmatpush1.msra.mxu0 0.0
    %1460 = vmatprep.subr.mxu0 0.0
    %1461 = vmatpush1.msra.mxu0 0.0
    %1462 = vmatprep.subr.mxu0 0.0
    %1463 = vmatpush1.msra.mxu0 0.0
    %1464 = vmatprep.subr.mxu0 0.0
    %1465 = vmatpush1.msra.mxu0 0.0
    %1466 = vmatprep.subr.mxu0 0.0
    %1467 = vmatpush1.msra.mxu0 0.0
    %1468 = vmatprep.subr.mxu0 0.0
    %1469 = vmatpush1.msra.mxu0 0.0
    %1470 = vmatprep.subr.mxu0 0.0
    %1471 = vmatpush1.msra.mxu0 0.0
    %1472 = vmatprep.subr.mxu0 0.0
    %1473 = vmatpush1.msra.mxu0 0.0
    %1474 = vmatprep.subr.mxu0 0.0
    %1475 = vmatpush1.msra.mxu0 0.0
    %1476 = vmatprep.subr.mxu0 0.0
    %1477 = vmatpush1.msra.mxu0 0.0
    %1478 = vmatprep.subr.mxu0 0.0
    %1479 = vmatpush1.msra.mxu0 0.0
    %1480 = vmatprep.subr.mxu0 0.0
    %1481 = vmatpush1.msra.mxu0 0.0
    %1482 = vmatprep.subr.mxu0 0.0
    %1483 = vmatpush1.msra.mxu0 0.0
    %1484 = vmatprep.subr.mxu0 0.0
    %1485 = vmatpush1.msra.mxu0 0.0
    %1486 = vmatprep.subr.mxu0 0.0
    %1487 = vmatpush1.msra.mxu0 0.0
    %1488 = vmatprep.subr.mxu0 0.0
    %1489 = vmatpush1.msra.mxu0 0.0
    %1490 = vmatprep.subr.mxu0 0.0
    %1491 = vmatpush1.msra.mxu0 0.0
    %1492 = vmatprep.subr.mxu0 0.0
    %1493 = vmatpush1.msra.mxu0 0.0
    %1494 = vmatprep.subr.mxu0 0.0
    %1495 = vmatpush1.msra.mxu0 0.0
    %1496 = vmatprep.subr.mxu0 0.0
    %1497 = vmatpush1.msra.mxu0 0.0
    %1498 = vmatprep.subr.mxu0 0.0
    %1499 = vmatpush1.msra.mxu0 0.0
    %1500 = vmatprep.subr.mxu0 0.0
    %1501 = vmatpush1.msra.mxu0 0.0
    %1502 = vmatprep.subr.mxu0 0.0
    %1503 = vmatpush1.msra.mxu0 0.0
    %1504 = vmatprep.subr.mxu0 0.0
    %1505 = vmatpush1.msra.mxu0 0.0
    %1506 = vmatprep.subr.mxu0 0.0
    %1507 = vmatpush1.msra.mxu0 0.0
    %1508 = vmatprep.subr.mxu0 0.0
    %1509 = vmatpush1.msra.mxu0 0.0
    %1510 = vmatprep.subr.mxu0 0.0
    %1511 = vmatpush1.msra.mxu0 0.0
    %1512 = vmatprep.subr.mxu0 0.0
    %1513 = vmatpush1.msra.mxu0 0.0
    %1514 = vmatprep.subr.mxu0 0.0
    %1515 = vmatpush1.msra.mxu0 0.0
    %1516 = vmatprep.mubr.f32.mxu0 0.0
    %1517 = vmatmul.mubr.f32.gmra.mrb[0].mxu0 %v1450
    %v1518 = vpop.f32.mrb[0].mxu0
    %v1519 = vadd.f32 0.0, %v1518
    %v1520 = vpop.f32.mrb[0].mxu0
    %1521 = vdwg.mxu0
    %1522 = vrot.lane.b32.xlu0 %v157, 88
    %v1523 = vpop.permute.xlu0 %1522
    %v1526 = vsel %vm925, %v1062, 0
    %1528 = vmatprep.subr.mxu0 0.0
    %1529 = vmatpush1.msra.mxu0 %v1523
    %1530 = vmatprep.subr.mxu0 0.0
    %1531 = vmatpush1.msra.mxu0 0.0
    %1532 = vmatprep.subr.mxu0 0.0
    %1533 = vmatpush1.msra.mxu0 0.0
    %1534 = vmatprep.subr.mxu0 0.0
    %1535 = vmatpush1.msra.mxu0 0.0
    %1536 = vmatprep.subr.mxu0 0.0
    %1537 = vmatpush1.msra.mxu0 0.0
    %1538 = vmatprep.subr.mxu0 0.0
    %1539 = vmatpush1.msra.mxu0 0.0
    %1540 = vmatprep.subr.mxu0 0.0
    %1541 = vmatpush1.msra.mxu0 0.0
    %1542 = vmatprep.subr.mxu0 0.0
    %1543 = vmatpush1.msra.mxu0 0.0
    %1544 = vmatprep.subr.mxu0 0.0
    %1545 = vmatpush1.msra.mxu0 0.0
    %1546 = vmatprep.subr.mxu0 0.0
    %1547 = vmatpush1.msra.mxu0 0.0
    %1548 = vmatprep.subr.mxu0 0.0
    %1549 = vmatpush1.msra.mxu0 0.0
    %1550 = vmatprep.subr.mxu0 0.0
    %1551 = vmatpush1.msra.mxu0 0.0
    %1552 = vmatprep.subr.mxu0 0.0
    %1553 = vmatpush1.msra.mxu0 0.0
    %1554 = vmatprep.subr.mxu0 0.0
    %1555 = vmatpush1.msra.mxu0 0.0
    %1556 = vmatprep.subr.mxu0 0.0
    %1557 = vmatpush1.msra.mxu0 0.0
    %1558 = vmatprep.subr.mxu0 0.0
    %1559 = vmatpush1.msra.mxu0 0.0
    %1560 = vmatprep.subr.mxu0 0.0
    %1561 = vmatpush1.msra.mxu0 0.0
    %1562 = vmatprep.subr.mxu0 0.0
    %1563 = vmatpush1.msra.mxu0 0.0
    %1564 = vmatprep.subr.mxu0 0.0
    %1565 = vmatpush1.msra.mxu0 0.0
    %1566 = vmatprep.subr.mxu0 0.0
    %1567 = vmatpush1.msra.mxu0 0.0
    %1568 = vmatprep.subr.mxu0 0.0
    %1569 = vmatpush1.msra.mxu0 0.0
    %1570 = vmatprep.subr.mxu0 0.0
    %1571 = vmatpush1.msra.mxu0 0.0
    %1572 = vmatprep.subr.mxu0 0.0
    %1573 = vmatpush1.msra.mxu0 0.0
    %1574 = vmatprep.subr.mxu0 0.0
    %1575 = vmatpush1.msra.mxu0 0.0
    %1576 = vmatprep.subr.mxu0 0.0
    %1577 = vmatpush1.msra.mxu0 0.0
    %1578 = vmatprep.subr.mxu0 0.0
    %1579 = vmatpush1.msra.mxu0 0.0
    %1580 = vmatprep.subr.mxu0 0.0
    %1581 = vmatpush1.msra.mxu0 0.0
    %1582 = vmatprep.subr.mxu0 0.0
    %1583 = vmatpush1.msra.mxu0 0.0
    %1584 = vmatprep.subr.mxu0 0.0
    %1585 = vmatpush1.msra.mxu0 0.0
    %1586 = vmatprep.subr.mxu0 0.0
    %1587 = vmatpush1.msra.mxu0 0.0
    %1588 = vmatprep.subr.mxu0 0.0
    %1589 = vmatpush1.msra.mxu0 0.0
    %1590 = vmatprep.subr.mxu0 0.0
    %1591 = vmatpush1.msra.mxu0 0.0
    %1592 = vmatprep.mubr.f32.mxu0 0.0
    %1593 = vmatmul.mubr.f32.gmra.mrb[0].mxu0 %v1526
    %v1594 = vpop.f32.mrb[0].mxu0
    %v1595 = vadd.f32 0.0, %v1594
    %v1596 = vpop.f32.mrb[0].mxu0
    %1597 = vdwg.mxu0
    %1598 = vrot.lane.b32.xlu0 %v159, 88
    %v1599 = vpop.permute.xlu0 %1598
    %v1602 = vsel %vm925, %v1063, 0
    %1604 = vmatprep.subr.mxu0 0.0
    %1605 = vmatpush1.msra.mxu0 %v1599
    %1606 = vmatprep.subr.mxu0 0.0
    %1607 = vmatpush1.msra.mxu0 0.0
    %1608 = vmatprep.subr.mxu0 0.0
    %1609 = vmatpush1.msra.mxu0 0.0
    %1610 = vmatprep.subr.mxu0 0.0
    %1611 = vmatpush1.msra.mxu0 0.0
    %1612 = vmatprep.subr.mxu0 0.0
    %1613 = vmatpush1.msra.mxu0 0.0
    %1614 = vmatprep.subr.mxu0 0.0
    %1615 = vmatpush1.msra.mxu0 0.0
    %1616 = vmatprep.subr.mxu0 0.0
    %1617 = vmatpush1.msra.mxu0 0.0
    %1618 = vmatprep.subr.mxu0 0.0
    %1619 = vmatpush1.msra.mxu0 0.0
    %1620 = vmatprep.subr.mxu0 0.0
    %1621 = vmatpush1.msra.mxu0 0.0
    %1622 = vmatprep.subr.mxu0 0.0
    %1623 = vmatpush1.msra.mxu0 0.0
    %1624 = vmatprep.subr.mxu0 0.0
    %1625 = vmatpush1.msra.mxu0 0.0
    %1626 = vmatprep.subr.mxu0 0.0
    %1627 = vmatpush1.msra.mxu0 0.0
    %1628 = vmatprep.subr.mxu0 0.0
    %1629 = vmatpush1.msra.mxu0 0.0
    %1630 = vmatprep.subr.mxu0 0.0
    %1631 = vmatpush1.msra.mxu0 0.0
    %1632 = vmatprep.subr.mxu0 0.0
    %1633 = vmatpush1.msra.mxu0 0.0
    %1634 = vmatprep.subr.mxu0 0.0
    %1635 = vmatpush1.msra.mxu0 0.0
    %1636 = vmatprep.subr.mxu0 0.0
    %1637 = vmatpush1.msra.mxu0 0.0
    %1638 = vmatprep.subr.mxu0 0.0
    %1639 = vmatpush1.msra.mxu0 0.0
    %1640 = vmatprep.subr.mxu0 0.0
    %1641 = vmatpush1.msra.mxu0 0.0
    %1642 = vmatprep.subr.mxu0 0.0
    %1643 = vmatpush1.msra.mxu0 0.0
    %1644 = vmatprep.subr.mxu0 0.0
    %1645 = vmatpush1.msra.mxu0 0.0
    %1646 = vmatprep.subr.mxu0 0.0
    %1647 = vmatpush1.msra.mxu0 0.0
    %1648 = vmatprep.subr.mxu0 0.0
    %1649 = vmatpush1.msra.mxu0 0.0
    %1650 = vmatprep.subr.mxu0 0.0
    %1651 = vmatpush1.msra.mxu0 0.0
    %1652 = vmatprep.subr.mxu0 0.0
    %1653 = vmatpush1.msra.mxu0 0.0
    %1654 = vmatprep.subr.mxu0 0.0
    %1655 = vmatpush1.msra.mxu0 0.0
    %1656 = vmatprep.subr.mxu0 0.0
    %1657 = vmatpush1.msra.mxu0 0.0
    %1658 = vmatprep.subr.mxu0 0.0
    %1659 = vmatpush1.msra.mxu0 0.0
    %1660 = vmatprep.subr.mxu0 0.0
    %1661 = vmatpush1.msra.mxu0 0.0
    %1662 = vmatprep.subr.mxu0 0.0
    %1663 = vmatpush1.msra.mxu0 0.0
    %1664 = vmatprep.subr.mxu0 0.0
    %1665 = vmatpush1.msra.mxu0 0.0
    %1666 = vmatprep.subr.mxu0 0.0
    %1667 = vmatpush1.msra.mxu0 0.0
    %1668 = vmatprep.mubr.f32.mxu0 0.0
    %1669 = vmatmul.mubr.f32.gmra.mrb[0].mxu0 %v1602
    %v1670 = vpop.f32.mrb[0].mxu0
    %v1671 = vadd.f32 0.0, %v1670
    %v1672 = vpop.f32.mrb[0].mxu0
    %1673 = vdwg.mxu0
    %1674 = vrot.lane.b32.xlu0 %v161, 88
    %v1675 = vpop.permute.xlu0 %1674
    %v1678 = vsel %vm925, %v1064, 0
    %1680 = vmatprep.subr.mxu0 0.0
    %1681 = vmatpush1.msra.mxu0 %v1675
    %1682 = vmatprep.subr.mxu0 0.0
    %1683 = vmatpush1.msra.mxu0 0.0
    %1684 = vmatprep.subr.mxu0 0.0
    %1685 = vmatpush1.msra.mxu0 0.0
    %1686 = vmatprep.subr.mxu0 0.0
    %1687 = vmatpush1.msra.mxu0 0.0
    %1688 = vmatprep.subr.mxu0 0.0
    %1689 = vmatpush1.msra.mxu0 0.0
    %1690 = vmatprep.subr.mxu0 0.0
    %1691 = vmatpush1.msra.mxu0 0.0
    %1692 = vmatprep.subr.mxu0 0.0
    %1693 = vmatpush1.msra.mxu0 0.0
    %1694 = vmatprep.subr.mxu0 0.0
    %1695 = vmatpush1.msra.mxu0 0.0
    %1696 = vmatprep.subr.mxu0 0.0
    %1697 = vmatpush1.msra.mxu0 0.0
    %1698 = vmatprep.subr.mxu0 0.0
    %1699 = vmatpush1.msra.mxu0 0.0
    %1700 = vmatprep.subr.mxu0 0.0
    %1701 = vmatpush1.msra.mxu0 0.0
    %1702 = vmatprep.subr.mxu0 0.0
    %1703 = vmatpush1.msra.mxu0 0.0
    %1704 = vmatprep.subr.mxu0 0.0
    %1705 = vmatpush1.msra.mxu0 0.0
    %1706 = vmatprep.subr.mxu0 0.0
    %1707 = vmatpush1.msra.mxu0 0.0
    %1708 = vmatprep.subr.mxu0 0.0
    %1709 = vmatpush1.msra.mxu0 0.0
    %1710 = vmatprep.subr.mxu0 0.0
    %1711 = vmatpush1.msra.mxu0 0.0
    %1712 = vmatprep.subr.mxu0 0.0
    %1713 = vmatpush1.msra.mxu0 0.0
    %1714 = vmatprep.subr.mxu0 0.0
    %1715 = vmatpush1.msra.mxu0 0.0
    %1716 = vmatprep.subr.mxu0 0.0
    %1717 = vmatpush1.msra.mxu0 0.0
    %1718 = vmatprep.subr.mxu0 0.0
    %1719 = vmatpush1.msra.mxu0 0.0
    %1720 = vmatprep.subr.mxu0 0.0
    %1721 = vmatpush1.msra.mxu0 0.0
    %1722 = vmatprep.subr.mxu0 0.0
    %1723 = vmatpush1.msra.mxu0 0.0
    %1724 = vmatprep.subr.mxu0 0.0
    %1725 = vmatpush1.msra.mxu0 0.0
    %1726 = vmatprep.subr.mxu0 0.0
    %1727 = vmatpush1.msra.mxu0 0.0
    %1728 = vmatprep.subr.mxu0 0.0
    %1729 = vmatpush1.msra.mxu0 0.0
    %1730 = vmatprep.subr.mxu0 0.0
    %1731 = vmatpush1.msra.mxu0 0.0
    %1732 = vmatprep.subr.mxu0 0.0
    %1733 = vmatpush1.msra.mxu0 0.0
    %1734 = vmatprep.subr.mxu0 0.0
    %1735 = vmatpush1.msra.mxu0 0.0
    %1736 = vmatprep.subr.mxu0 0.0
    %1737 = vmatpush1.msra.mxu0 0.0
    %1738 = vmatprep.subr.mxu0 0.0
    %1739 = vmatpush1.msra.mxu0 0.0
    %1740 = vmatprep.subr.mxu0 0.0
    %1741 = vmatpush1.msra.mxu0 0.0
    %1742 = vmatprep.subr.mxu0 0.0
    %1743 = vmatpush1.msra.mxu0 0.0
    %1744 = vmatprep.mubr.f32.mxu0 0.0
    %1745 = vmatmul.mubr.f32.gmra.mrb[0].mxu0 %v1678
    %v1746 = vpop.f32.mrb[0].mxu0
    %v1747 = vadd.f32 0.0, %v1746
    %v1748 = vpop.f32.mrb[0].mxu0
    %1749 = vdwg.mxu0
    %1750 = vrot.lane.b32.xlu0 %v163, 88
    %v1751 = vpop.permute.xlu0 %1750
    %v1754 = vsel %vm925, %v1065, 0
    %1756 = vmatprep.subr.mxu0 0.0
    %1757 = vmatpush1.msra.mxu0 %v1751
    %1758 = vmatprep.subr.mxu0 0.0
    %1759 = vmatpush1.msra.mxu0 0.0
    %1760 = vmatprep.subr.mxu0 0.0
    %1761 = vmatpush1.msra.mxu0 0.0
    %1762 = vmatprep.subr.mxu0 0.0
    %1763 = vmatpush1.msra.mxu0 0.0
    %1764 = vmatprep.subr.mxu0 0.0
    %1765 = vmatpush1.msra.mxu0 0.0
    %1766 = vmatprep.subr.mxu0 0.0
    %1767 = vmatpush1.msra.mxu0 0.0
    %1768 = vmatprep.subr.mxu0 0.0
    %1769 = vmatpush1.msra.mxu0 0.0
    %1770 = vmatprep.subr.mxu0 0.0
    %1771 = vmatpush1.msra.mxu0 0.0
    %1772 = vmatprep.subr.mxu0 0.0
    %1773 = vmatpush1.msra.mxu0 0.0
    %1774 = vmatprep.subr.mxu0 0.0
    %1775 = vmatpush1.msra.mxu0 0.0
    %1776 = vmatprep.subr.mxu0 0.0
    %1777 = vmatpush1.msra.mxu0 0.0
    %1778 = vmatprep.subr.mxu0 0.0
    %1779 = vmatpush1.msra.mxu0 0.0
    %1780 = vmatprep.subr.mxu0 0.0
    %1781 = vmatpush1.msra.mxu0 0.0
    %1782 = vmatprep.subr.mxu0 0.0
    %1783 = vmatpush1.msra.mxu0 0.0
    %1784 = vmatprep.subr.mxu0 0.0
    %1785 = vmatpush1.msra.mxu0 0.0
    %1786 = vmatprep.subr.mxu0 0.0
    %1787 = vmatpush1.msra.mxu0 0.0
    %1788 = vmatprep.subr.mxu0 0.0
    %1789 = vmatpush1.msra.mxu0 0.0
    %1790 = vmatprep.subr.mxu0 0.0
    %1791 = vmatpush1.msra.mxu0 0.0
    %1792 = vmatprep.subr.mxu0 0.0
    %1793 = vmatpush1.msra.mxu0 0.0
    %1794 = vmatprep.subr.mxu0 0.0
    %1795 = vmatpush1.msra.mxu0 0.0
    %1796 = vmatprep.subr.mxu0 0.0
    %1797 = vmatpush1.msra.mxu0 0.0
    %1798 = vmatprep.subr.mxu0 0.0
    %1799 = vmatpush1.msra.mxu0 0.0
    %1800 = vmatprep.subr.mxu0 0.0
    %1801 = vmatpush1.msra.mxu0 0.0
    %1802 = vmatprep.subr.mxu0 0.0
    %1803 = vmatpush1.msra.mxu0 0.0
    %1804 = vmatprep.subr.mxu0 0.0
    %1805 = vmatpush1.msra.mxu0 0.0
    %1806 = vmatprep.subr.mxu0 0.0
    %1807 = vmatpush1.msra.mxu0 0.0
    %1808 = vmatprep.subr.mxu0 0.0
    %1809 = vmatpush1.msra.mxu0 0.0
    %1810 = vmatprep.subr.mxu0 0.0
    %1811 = vmatpush1.msra.mxu0 0.0
    %1812 = vmatprep.subr.mxu0 0.0
    %1813 = vmatpush1.msra.mxu0 0.0
    %1814 = vmatprep.subr.mxu0 0.0
    %1815 = vmatpush1.msra.mxu0 0.0
    %1816 = vmatprep.subr.mxu0 0.0
    %1817 = vmatpush1.msra.mxu0 0.0
    %1818 = vmatprep.subr.mxu0 0.0
    %1819 = vmatpush1.msra.mxu0 0.0
    %1820 = vmatprep.mubr.f32.mxu0 0.0
    %1821 = vmatmul.mubr.f32.gmra.mrb[0].mxu0 %v1754
    %v1822 = vpop.f32.mrb[0].mxu0
    %v1823 = vadd.f32 0.0, %v1822
    %v1824 = vpop.f32.mrb[0].mxu0
    %1825 = vdwg.mxu0
    %1827 = vrot.lane.b32.xlu0 %v1215, 4
    %v1828 = vpop.permute.xlu0 %1827
    %1831 = vrot.lane.b32.xlu0 %v1291, 8
    %v1832 = vpop.permute.xlu0 %1831
    %1835 = vrot.lane.b32.xlu0 %v1367, 12
    %v1836 = vpop.permute.xlu0 %1835
    %1839 = vrot.lane.b32.xlu0 %v1443, 16
    %v1840 = vpop.permute.xlu0 %1839
    %v1842 = vsel %vm166, %v1139, %v1828
    %v1843 = vsel %vm925, %v1842, %v1832
    %vm1844 = vcmask 97280
    %v1845 = vsel %vm1844, %v1843, %v1836
    %vm1846 = vcmask 130048
    %v1847 = vsel %vm1846, %v1845, %v1840
    %1849 = vrot.lane.b32.xlu0 %v1595, 4
    %v1850 = vpop.permute.xlu0 %1849
    %1853 = vrot.lane.b32.xlu0 %v1671, 8
    %v1854 = vpop.permute.xlu0 %1853
    %1857 = vrot.lane.b32.xlu0 %v1747, 12
    %v1858 = vpop.permute.xlu0 %1857
    %1861 = vrot.lane.b32.xlu0 %v1823, 16
    %v1862 = vpop.permute.xlu0 %1861
    %v1864 = vsel %vm166, %v1519, %v1850
    %v1865 = vsel %vm925, %v1864, %v1854
    %v1866 = vsel %vm1844, %v1865, %v1858
    %v1867 = vsel %vm1846, %v1866, %v1862
    %v1868 = vlaneseq
    %v1869 = vshrl.u32 %v1868, 7
    %v1870 = vsub.s32 4, %v1869
    %v1871 = vrot.slane %v47, %v1870
    %v1873 = vsel %vm60, %v1847, 0
    %v1876 = vsel %vm60, %v1867, 0
    %v1879 = vsel %vm67, %v47, 0
    %1881 = vmatprep.subr.mxu0 0.0
    %1882 = vmatpush1.msra.mxu0 %v45
    %1883 = vmatprep.subr.mxu0 0.0
    %1884 = vmatpush1.msra.mxu0 %v46
    %1885 = vmatprep.subr.mxu0 0.0
    %1886 = vmatpush1.msra.mxu0 %v1879
    %1887 = vmatprep.subr.mxu0 0.0
    %1888 = vmatpush1.msra.mxu0 0.0
    %1889 = vmatprep.subr.mxu0 0.0
    %1890 = vmatpush1.msra.mxu0 0.0
    %1891 = vmatprep.subr.mxu0 0.0
    %1892 = vmatpush1.msra.mxu0 0.0
    %1893 = vmatprep.subr.mxu0 0.0
    %1894 = vmatpush1.msra.mxu0 0.0
    %1895 = vmatprep.subr.mxu0 0.0
    %1896 = vmatpush1.msra.mxu0 0.0
    %1897 = vmatprep.subr.mxu0 0.0
    %1898 = vmatpush1.msra.mxu0 0.0
    %1899 = vmatprep.subr.mxu0 0.0
    %1900 = vmatpush1.msra.mxu0 0.0
    %1901 = vmatprep.subr.mxu0 0.0
    %1902 = vmatpush1.msra.mxu0 0.0
    %1903 = vmatprep.subr.mxu0 0.0
    %1904 = vmatpush1.msra.mxu0 0.0
    %1905 = vmatprep.subr.mxu0 0.0
    %1906 = vmatpush1.msra.mxu0 0.0
    %1907 = vmatprep.subr.mxu0 0.0
    %1908 = vmatpush1.msra.mxu0 0.0
    %1909 = vmatprep.subr.mxu0 0.0
    %1910 = vmatpush1.msra.mxu0 0.0
    %1911 = vmatprep.subr.mxu0 0.0
    %1912 = vmatpush1.msra.mxu0 0.0
    %1913 = vmatprep.subr.mxu0 0.0
    %1914 = vmatpush1.msra.mxu0 0.0
    %1915 = vmatprep.subr.mxu0 0.0
    %1916 = vmatpush1.msra.mxu0 0.0
    %1917 = vmatprep.subr.mxu0 0.0
    %1918 = vmatpush1.msra.mxu0 0.0
    %1919 = vmatprep.subr.mxu0 0.0
    %1920 = vmatpush1.msra.mxu0 0.0
    %1921 = vmatprep.subr.mxu0 0.0
    %1922 = vmatpush1.msra.mxu0 0.0
    %1923 = vmatprep.subr.mxu0 0.0
    %1924 = vmatpush1.msra.mxu0 0.0
    %1925 = vmatprep.subr.mxu0 0.0
    %1926 = vmatpush1.msra.mxu0 0.0
    %1927 = vmatprep.subr.mxu0 0.0
    %1928 = vmatpush1.msra.mxu0 0.0
    %1929 = vmatprep.subr.mxu0 0.0
    %1930 = vmatpush1.msra.mxu0 0.0
    %1931 = vmatprep.subr.mxu0 0.0
    %1932 = vmatpush1.msra.mxu0 0.0
    %1933 = vmatprep.subr.mxu0 0.0
    %1934 = vmatpush1.msra.mxu0 0.0
    %1935 = vmatprep.subr.mxu0 0.0
    %1936 = vmatpush1.msra.mxu0 0.0
    %1937 = vmatprep.subr.mxu0 0.0
    %1938 = vmatpush1.msra.mxu0 0.0
    %1939 = vmatprep.subr.mxu0 0.0
    %1940 = vmatpush1.msra.mxu0 0.0
    %1941 = vmatprep.subr.mxu0 0.0
    %1942 = vmatpush1.msra.mxu0 0.0
    %1943 = vmatprep.subr.mxu0 0.0
    %1944 = vmatpush1.msra.mxu0 0.0
    %1945 = vmatprep.mubr.f32.mxu0 0.0
    %1946 = vmatmul.mubr.f32.gmra.mrb[0].mxu0 %v1873
    %v1947 = vpop.f32.mrb[0].mxu0
    %v1948 = vadd.f32 %v1871, %v1947
    %v1949 = vpop.f32.mrb[0].mxu0
    %1950 = vmatprep.mubr.f32.mxu0 0.0
    %1951 = vmatmul.mubr.f32.gmra.mrb[0].mxu0 %v1876
    %v1952 = vpop.f32.mrb[0].mxu0
    %v1953 = vadd.f32 %v1871, %v1952
    %v1954 = vpop.f32.mrb[0].mxu0
    %1955 = vdwg.mxu0
    %v1956 = vadd.f32 %v40, %v1948
    %v1957 = vadd.f32 %v41, %v1953
    %v1958 = vsel %vm60, %v1956, 0.0
    %1959 = vadd.xlane.f32.xlu0 %v1958
    %v1960 = vpop.xlane.xlu0 %1959
    %v1961 = vsel %vm60, %v1957, 0.0
    %1962 = vadd.xlane.f32.xlu0 %v1961
    %v1963 = vpop.xlane.xlu0 %1962
    %v1964 = vrcp.pop 20.0
    %v1965 = vmul.f32 %v1960, %v1964
    %v1966 = vmul.f32 %v1963, %v1964
    %v1967 = vsub.f32 %v1956, %v1965
    %v1968 = vsub.f32 %v1957, %v1966
    %v1969 = vmul.f32 %v1967, %v1967
    %v1970 = vmul.f32 %v1968, %v1968
    %v1971 = vsel %vm60, %v1969, 0.0
    %1972 = vadd.xlane.f32.xlu0 %v1971
    %v1973 = vpop.xlane.xlu0 %1972
    %v1974 = vsel %vm60, %v1970, 0.0
    %1975 = vadd.xlane.f32.xlu0 %v1974
    %v1976 = vpop.xlane.xlu0 %1975
    %v1977 = vmul.f32 %v1973, %v1964
    %v1978 = vmul.f32 %v1976, %v1964
    %v1979 = vadd.f32 %v1977, 1e-05
    %v1980 = vadd.f32 %v1978, 1e-05
    %v1981 = vrsqrt.pop %v1979
    %v1982 = vrsqrt.pop %v1980
    %v1983 = vmul.f32 %v1967, %v1981
    %v1984 = vmul.f32 %v1968, %v1982
    %v1985 = vlaneseq
    %v1986 = vshrl.u32 %v1985, 7
    %v1987 = vsub.s32 5, %v1986
    %v1988 = vrot.slane %v47, %v1987
    %v1989 = vmul.f32 %v1983, %v1988
    %v1990 = vmul.f32 %v1984, %v1988
    %v1991 = vlaneseq
    %v1992 = vshrl.u32 %v1991, 7
    %v1993 = vsub.s32 6, %v1992
    %v1994 = vrot.slane %v47, %v1993
    %v1995 = vadd.f32 %v1989, %v1994
    %v1996 = vadd.f32 %v1990, %v1994
    %v1997 = vlaneseq
    %v1998 = vshrl.u32 %v1997, 7
    %v1999 = vsub.s32 4, %v1998
    %v2000 = vrot.slane %v50, %v1999
    %v2002 = vsel %vm60, %v1995, 0
    %v2005 = vsel %vm60, %v1996, 0
    %v2008 = vsel %vm67, %v50, 0
    %2010 = vmatprep.subr.mxu0 0.0
    %2011 = vmatpush1.msra.mxu0 %v48
    %2012 = vmatprep.subr.mxu0 0.0
    %2013 = vmatpush1.msra.mxu0 %v49
    %2014 = vmatprep.subr.mxu0 0.0
    %2015 = vmatpush1.msra.mxu0 %v2008
    %2016 = vmatprep.subr.mxu0 0.0
    %2017 = vmatpush1.msra.mxu0 0.0
    %2018 = vmatprep.subr.mxu0 0.0
    %2019 = vmatpush1.msra.mxu0 0.0
    %2020 = vmatprep.subr.mxu0 0.0
    %2021 = vmatpush1.msra.mxu0 0.0
    %2022 = vmatprep.subr.mxu0 0.0
    %2023 = vmatpush1.msra.mxu0 0.0
    %2024 = vmatprep.subr.mxu0 0.0
    %2025 = vmatpush1.msra.mxu0 0.0
    %2026 = vmatprep.subr.mxu0 0.0
    %2027 = vmatpush1.msra.mxu0 0.0
    %2028 = vmatprep.subr.mxu0 0.0
    %2029 = vmatpush1.msra.mxu0 0.0
    %2030 = vmatprep.subr.mxu0 0.0
    %2031 = vmatpush1.msra.mxu0 0.0
    %2032 = vmatprep.subr.mxu0 0.0
    %2033 = vmatpush1.msra.mxu0 0.0
    %2034 = vmatprep.subr.mxu0 0.0
    %2035 = vmatpush1.msra.mxu0 0.0
    %2036 = vmatprep.subr.mxu0 0.0
    %2037 = vmatpush1.msra.mxu0 0.0
    %2038 = vmatprep.subr.mxu0 0.0
    %2039 = vmatpush1.msra.mxu0 0.0
    %2040 = vmatprep.subr.mxu0 0.0
    %2041 = vmatpush1.msra.mxu0 0.0
    %2042 = vmatprep.subr.mxu0 0.0
    %2043 = vmatpush1.msra.mxu0 0.0
    %2044 = vmatprep.subr.mxu0 0.0
    %2045 = vmatpush1.msra.mxu0 0.0
    %2046 = vmatprep.subr.mxu0 0.0
    %2047 = vmatpush1.msra.mxu0 0.0
    %2048 = vmatprep.subr.mxu0 0.0
    %2049 = vmatpush1.msra.mxu0 0.0
    %2050 = vmatprep.subr.mxu0 0.0
    %2051 = vmatpush1.msra.mxu0 0.0
    %2052 = vmatprep.subr.mxu0 0.0
    %2053 = vmatpush1.msra.mxu0 0.0
    %2054 = vmatprep.subr.mxu0 0.0
    %2055 = vmatpush1.msra.mxu0 0.0
    %2056 = vmatprep.subr.mxu0 0.0
    %2057 = vmatpush1.msra.mxu0 0.0
    %2058 = vmatprep.subr.mxu0 0.0
    %2059 = vmatpush1.msra.mxu0 0.0
    %2060 = vmatprep.subr.mxu0 0.0
    %2061 = vmatpush1.msra.mxu0 0.0
    %2062 = vmatprep.subr.mxu0 0.0
    %2063 = vmatpush1.msra.mxu0 0.0
    %2064 = vmatprep.subr.mxu0 0.0
    %2065 = vmatpush1.msra.mxu0 0.0
    %2066 = vmatprep.subr.mxu0 0.0
    %2067 = vmatpush1.msra.mxu0 0.0
    %2068 = vmatprep.subr.mxu0 0.0
    %2069 = vmatpush1.msra.mxu0 0.0
    %2070 = vmatprep.subr.mxu0 0.0
    %2071 = vmatpush1.msra.mxu0 0.0
    %2072 = vmatprep.subr.mxu0 0.0
    %2073 = vmatpush1.msra.mxu0 0.0
    %2074 = vmatprep.mubr.f32.mxu0 0.0
    %2075 = vmatmul.mubr.f32.gmra.mrb[0].mxu0 %v2002
    %v2076 = vpop.f32.mrb[0].mxu0
    %v2077 = vadd.f32 %v2000, %v2076
    %v2078 = vpop.f32.mrb[0].mxu0
    %2079 = vmatprep.mubr.f32.mxu0 0.0
    %2080 = vmatmul.mubr.f32.gmra.mrb[0].mxu0 %v2005
    %v2081 = vpop.f32.mrb[0].mxu0
    %v2082 = vadd.f32 %v2000, %v2081
    %v2083 = vpop.f32.mrb[0].mxu0
    %2084 = vdwg.mxu0
    %v2085 = vmul.f32 %v2077, 0.5
    %v2086 = vmul.f32 %v2082, 0.5
    %v2087 = vmul.f32 %v2077, 0.70710677
    %v2088 = vmul.f32 %v2082, 0.70710677
    %v2089 = verf.f32.pop %v2087
    %v2090 = verf.f32.pop %v2088
    %v2091 = vadd.f32 %v2089, 1.0
    %v2092 = vadd.f32 %v2090, 1.0
    %v2093 = vmul.f32 %v2085, %v2091
    %v2094 = vmul.f32 %v2086, %v2092
    %v2095 = vlaneseq
    %v2096 = vshrl.u32 %v2095, 7
    %v2097 = vsub.s32 0, %v2096
    %v2098 = vrot.slane %v55, %v2097
    %vm2099 = vcmask 261120
    %v2101 = vsel %vm2099, %v2093, 0
    %v2104 = vsel %vm2099, %v2094, 0
    %2106 = vmatprep.subr.mxu0 0.0
    %2107 = vmatpush1.msra.mxu0 %v51
    %2108 = vmatprep.subr.mxu0 0.0
    %2109 = vmatpush1.msra.mxu0 %v52
    %2110 = vmatprep.subr.mxu0 0.0
    %2111 = vmatpush1.msra.mxu0 %v53
    %2112 = vmatprep.subr.mxu0 0.0
    %2113 = vmatpush1.msra.mxu0 %v54
    %2114 = vmatprep.subr.mxu0 0.0
    %2115 = vmatpush1.msra.mxu0 0.0
    %2116 = vmatprep.subr.mxu0 0.0
    %2117 = vmatpush1.msra.mxu0 0.0
    %2118 = vmatprep.subr.mxu0 0.0
    %2119 = vmatpush1.msra.mxu0 0.0
    %2120 = vmatprep.subr.mxu0 0.0
    %2121 = vmatpush1.msra.mxu0 0.0
    %2122 = vmatprep.subr.mxu0 0.0
    %2123 = vmatpush1.msra.mxu0 0.0
    %2124 = vmatprep.subr.mxu0 0.0
    %2125 = vmatpush1.msra.mxu0 0.0
    %2126 = vmatprep.subr.mxu0 0.0
    %2127 = vmatpush1.msra.mxu0 0.0
    %2128 = vmatprep.subr.mxu0 0.0
    %2129 = vmatpush1.msra.mxu0 0.0
    %2130 = vmatprep.subr.mxu0 0.0
    %2131 = vmatpush1.msra.mxu0 0.0
    %2132 = vmatprep.subr.mxu0 0.0
    %2133 = vmatpush1.msra.mxu0 0.0
    %2134 = vmatprep.subr.mxu0 0.0
    %2135 = vmatpush1.msra.mxu0 0.0
    %2136 = vmatprep.subr.mxu0 0.0
    %2137 = vmatpush1.msra.mxu0 0.0
    %2138 = vmatprep.subr.mxu0 0.0
    %2139 = vmatpush1.msra.mxu0 0.0
    %2140 = vmatprep.subr.mxu0 0.0
    %2141 = vmatpush1.msra.mxu0 0.0
    %2142 = vmatprep.subr.mxu0 0.0
    %2143 = vmatpush1.msra.mxu0 0.0
    %2144 = vmatprep.subr.mxu0 0.0
    %2145 = vmatpush1.msra.mxu0 0.0
    %2146 = vmatprep.subr.mxu0 0.0
    %2147 = vmatpush1.msra.mxu0 0.0
    %2148 = vmatprep.subr.mxu0 0.0
    %2149 = vmatpush1.msra.mxu0 0.0
    %2150 = vmatprep.subr.mxu0 0.0
    %2151 = vmatpush1.msra.mxu0 0.0
    %2152 = vmatprep.subr.mxu0 0.0
    %2153 = vmatpush1.msra.mxu0 0.0
    %2154 = vmatprep.subr.mxu0 0.0
    %2155 = vmatpush1.msra.mxu0 0.0
    %2156 = vmatprep.subr.mxu0 0.0
    %2157 = vmatpush1.msra.mxu0 0.0
    %2158 = vmatprep.subr.mxu0 0.0
    %2159 = vmatpush1.msra.mxu0 0.0
    %2160 = vmatprep.subr.mxu0 0.0
    %2161 = vmatpush1.msra.mxu0 0.0
    %2162 = vmatprep.subr.mxu0 0.0
    %2163 = vmatpush1.msra.mxu0 0.0
    %2164 = vmatprep.subr.mxu0 0.0
    %2165 = vmatpush1.msra.mxu0 0.0
    %2166 = vmatprep.subr.mxu0 0.0
    %2167 = vmatpush1.msra.mxu0 0.0
    %2168 = vmatprep.subr.mxu0 0.0
    %2169 = vmatpush1.msra.mxu0 0.0
    %2170 = vmatprep.mubr.f32.mxu0 0.0
    %2171 = vmatmul.mubr.f32.gmra.mrb[0].mxu0 %v2101
    %v2172 = vpop.f32.mrb[0].mxu0
    %v2173 = vadd.f32 %v2098, %v2172
    %v2174 = vpop.f32.mrb[0].mxu0
    %2175 = vmatprep.mubr.f32.mxu0 0.0
    %2176 = vmatmul.mubr.f32.gmra.mrb[0].mxu0 %v2104
    %v2177 = vpop.f32.mrb[0].mxu0
    %v2178 = vadd.f32 %v2098, %v2177
    %v2179 = vpop.f32.mrb[0].mxu0
    %2180 = vdwg.mxu0
    %v2181 = vadd.f32 %v1995, %v2173
    %v2182 = vadd.f32 %v1996, %v2178
    %v2183 = vsel %vm60, %v2181, 0.0
    %2184 = vadd.xlane.f32.xlu0 %v2183
    %v2185 = vpop.xlane.xlu0 %2184
    %v2186 = vsel %vm60, %v2182, 0.0
    %2187 = vadd.xlane.f32.xlu0 %v2186
    %v2188 = vpop.xlane.xlu0 %2187
    %v2189 = vmul.f32 %v2185, %v1964
    %v2190 = vmul.f32 %v2188, %v1964
    %v2191 = vsub.f32 %v2181, %v2189
    %v2192 = vsub.f32 %v2182, %v2190
    %v2193 = vmul.f32 %v2191, %v2191
    %v2194 = vmul.f32 %v2192, %v2192
    %v2195 = vsel %vm60, %v2193, 0.0
    %2196 = vadd.xlane.f32.xlu0 %v2195
    %v2197 = vpop.xlane.xlu0 %2196
    %v2198 = vsel %vm60, %v2194, 0.0
    %2199 = vadd.xlane.f32.xlu0 %v2198
    %v2200 = vpop.xlane.xlu0 %2199
    %v2201 = vmul.f32 %v2197, %v1964
    %v2202 = vmul.f32 %v2200, %v1964
    %v2203 = vadd.f32 %v2201, 1e-05
    %v2204 = vadd.f32 %v2202, 1e-05
    %v2205 = vrsqrt.pop %v2203
    %v2206 = vrsqrt.pop %v2204
    %v2207 = vmul.f32 %v2191, %v2205
    %v2208 = vmul.f32 %v2192, %v2206
    %v2209 = vlaneseq
    %v2210 = vshrl.u32 %v2209, 7
    %v2211 = vsub.s32 1, %v2210
    %v2212 = vrot.slane %v55, %v2211
    %v2213 = vmul.f32 %v2207, %v2212
    %v2214 = vmul.f32 %v2208, %v2212
    %v2215 = vlaneseq
    %v2216 = vshrl.u32 %v2215, 7
    %v2217 = vsub.s32 2, %v2216
    %v2218 = vrot.slane %v55, %v2217
    %v2219 = vadd.f32 %v2213, %v2218
    %v2220 = vadd.f32 %v2214, %v2218
    %2221 = vst.msk [vmem:[#allocation7] sm:$0xff] %vm60, %v2219
    %2222 = vst.msk [vmem:[#allocation7 + $0x8] sm:$0xff] %vm60, %v2220
    // Predicated region
    $region18: #{tpu_custom_call.1} parent=1 // pred_check
      _
    $region19: #{tpu_custom_call.1} parent=1 // pred_check_branch
      %2224 = sbr.rel (0) target = $region21
    $region20: #{tpu_custom_call.1} parent=1 // pred_region
      %s2226 = ssub.s32 256, 256
      %2227 = vsyncadd [#allocation4], %s2226
      %s2228 = sshll.u32 [#allocation7], 4
      %s2229 = int_to_ptr.vmem [resolvable:$true] %s2228
      %2234 = dma.vmem_to_hbm [thread:$0]  %s2229, 256, %s2, [#allocation4], 128, 128, 8
    $region21: #{tpu_custom_call.1} parent=1 // pred_fallthru
      _
    // Predicated region
    $region22: #{tpu_custom_call.1} parent=1 // pred_check
      _
    $region23: #{tpu_custom_call.1} parent=1 // pred_check_branch
      %2236 = sbr.rel (0) target = $region25
    $region24: #{tpu_custom_call.1} parent=1 // pred_region
      %2237 = dma.done [#allocation4], 256
    $region25: #{tpu_custom_call.1} parent=1 // pred_fallthru
      _
    %2238 = vsyncpa [#allocation3], 1
    %2239 = vsyncpa [#allocation6], 1
    %2240 = vsyncpa [#allocation4], 1

</llo_original>
